<compile_context>
chip_gen: v7x
topology: tpu7x:2x2x1
jax: 0.10.0
libtpu: 0.0.40
codegen_flags: <defaults>
</compile_context>

<pallas_src>
import numpy as np
import jax
import jax.numpy as jnp
from jax.experimental import pallas as pl
from jax.experimental.pallas import tpu as pltpu

HIDDEN_DIM = 32          # config.model.hidden_dim (small synthetic value)
ANNEAL_POWER = 2.0       # config.train.anneal_power (ConfGF default; compile-time 2.0)
SIGMA_BEGIN = 10.0       # config.model.sigma_begin
SIGMA_END = 0.01         # config.model.sigma_end
NUM_NOISE_LEVEL = 10     # config.model.num_noise_level
TWO_PI = 2.0 * np.pi

# Max lane-tile sizes: multiples of 256 (full v6e/v7x MXU N-dim per push).
# Per-block VMEM at 2048 lanes is < 2.5 MiB incl. double-buffering, safe on
# v5e/v6e (32 MiB scoped) and v7x (32 MiB scoped / 64 MiB physical).
MAX_EDGE_TILE = 2048
MAX_NODE_TILE = 2048


def _round_up(n, m):
    return ((n + m - 1) // m) * m


def _lane_tile(n, max_tile):
    """Largest 256-multiple tile that covers n, capped at max_tile."""
    return min(max_tile, _round_up(max(int(n), 1), 256))


def _pad_to(x, mult, axis, value=0.0):
    n = x.shape[axis]
    pad = (-n) % mult
    if pad == 0:
        return x
    widths = [(0, 0)] * x.ndim
    widths[axis] = (0, pad)
    return jnp.pad(x, widths, constant_values=value)


# --------------------------------------------------------------------------
# Kernel 1: per-edge pipeline (E-on-lanes layout)
#   d            = || pert_pos[row] - pert_pos[col] ||            (1, TE)
#   x_proj       = d * [W;W]*2*pi + [0;pi/2]                      (2H, TE)
#   d_emb        = sin(x_proj)          == [sin(dW2pi); cos(dW2pi)]
#   d_lin        = W_mlp @ d_emb + b    (single K=2H matmul,      (H, TE)
#                   ConfGF MLP applies no activation after the last layer)
#   edge_attr    = d_lin * edge_emb(edge_type)                    (H, TE)
# --------------------------------------------------------------------------
def edge_feature_kernel(diff_ref, etype_ref, wf_ref, phase_ref, w_ref, b_ref,
                        edge_attr_ref, d_ref):
    diff = diff_ref[...]                                        # (3, TE)
    # squared norm as three sublane-row VPU mul/adds (no cross-lane reduce)
    d2 = (diff[0:1] * diff[0:1]
          + diff[1:2] * diff[1:2]
          + diff[2:3] * diff[2:3])                              # (1, TE)
    d = jnp.sqrt(d2)                                            # (1, TE)
    d_ref[...] = d

    # fused sin/cos: rows 0..H-1 -> sin(d*W*2pi), rows H..2H-1 -> cos(d*W*2pi)
    x_proj = d * wf_ref[...] + phase_ref[...]                   # (2H, TE)
    s = jnp.sin(x_proj)
    d_lin = jnp.dot(w_ref[...], s,
                    preferred_element_type=jnp.float32) + b_ref[...]   # (H, TE)
    edge_attr_ref[...] = d_lin * etype_ref[...]                 # (H, TE)


def edge_features(diff_t, etype_t, wf2_2pi, phase, w_mlp, b_mlp):
    """E-on-lanes layout.
    diff_t:(3,E)  etype_t:(H,E)  wf2_2pi/phase:(2H,1)  w_mlp:(H,2H)  b_mlp:(H,1)
    returns edge_attr_t:(H,E), d_t:(1,E)."""
    H = etype_t.shape[0]
    H2 = wf2_2pi.shape[0]
    E = diff_t.shape[1]
    tile = _lane_tile(E, MAX_EDGE_TILE)
    diff_p = _pad_to(diff_t, tile, axis=1)
    etype_p = _pad_to(etype_t, tile, axis=1)
    e_pad = diff_p.shape[1]

    tiled = lambda i: (0, i)
    const = lambda i: (0, 0)     # same block index every step -> stays resident
    edge_attr_p, d_p = pl.pallas_call(
        edge_feature_kernel,
        out_shape=(jax.ShapeDtypeStruct((H, e_pad), jnp.float32),
                   jax.ShapeDtypeStruct((1, e_pad), jnp.float32)),
        grid=(e_pad // tile,),
        in_specs=[
            pl.BlockSpec((3, tile), tiled),     # diff
            pl.BlockSpec((H, tile), tiled),     # edge-type embedding
            pl.BlockSpec((H2, 1), const),       # [W;W]*2pi
            pl.BlockSpec((H2, 1), const),       # [0;pi/2]
            pl.BlockSpec((H, H2), const),       # Linear weight (H, 2H)
            pl.BlockSpec((H, 1), const),        # bias
        ],
        out_specs=(pl.BlockSpec((H, tile), tiled),
                   pl.BlockSpec((1, tile), tiled)),
        compiler_params=pltpu.CompilerParams(
            dimension_semantics=("parallel",)),   # shards over v7x's 2 TCs
    )(diff_p, etype_p, wf2_2pi, phase, w_mlp, b_mlp)
    return edge_attr_p[:, :E], d_p[:, :E]


# --------------------------------------------------------------------------
# Kernel 2: per-node score-matching loss (N-on-lanes layout)
#   target   = -1/sigma^2 * (pert_pos - pos)
#   scores   = gradient * (1/sigma)
#   loss     = 0.5 * sum((scores - target)^2) * sigma^2     (anneal_power = 2)
# --------------------------------------------------------------------------
def loss_kernel(grad_ref, pos_ref, pert_ref, sigma_ref, loss_ref):
    sigma = sigma_ref[...]                                      # (1, TN)
    inv_sigma = pl.reciprocal(sigma, approx=False)
    target = -(inv_sigma * inv_sigma) * (pert_ref[...] - pos_ref[...])  # (3, TN)
    scores = grad_ref[...] * inv_sigma                          # (3, TN)
    r = scores - target
    sq = r[0:1] * r[0:1] + r[1:2] * r[1:2] + r[2:3] * r[2:3]    # (1, TN)
    # sigma ** anneal_power with anneal_power == 2  ->  sigma * sigma (no exp/log)
    loss_ref[...] = 0.5 * sq * (sigma * sigma)                  # (1, TN)


def node_loss(grad_t, pos_t, pert_t, sigma_t):
    """N-on-lanes layout: (3,N) tensors + (1,N) sigmas -> per-node loss (N,)."""
    N = pos_t.shape[1]
    tile = _lane_tile(N, MAX_NODE_TILE)
    grad_p = _pad_to(grad_t, tile, axis=1)
    pos_p = _pad_to(pos_t, tile, axis=1)
    pert_p = _pad_to(pert_t, tile, axis=1)
    sigma_p = _pad_to(sigma_t, tile, axis=1, value=1.0)  # pad sigma=1 keeps 1/sigma finite
    n_pad = pos_p.shape[1]

    tiled = lambda i: (0, i)
    loss_p = pl.pallas_call(
        loss_kernel,
        out_shape=jax.ShapeDtypeStruct((1, n_pad), jnp.float32),
        grid=(n_pad // tile,),
        in_specs=[pl.BlockSpec((3, tile), tiled),
                  pl.BlockSpec((3, tile), tiled),
                  pl.BlockSpec((3, tile), tiled),
                  pl.BlockSpec((1, tile), tiled)],
        out_specs=pl.BlockSpec((1, tile), tiled),
        compiler_params=pltpu.CompilerParams(
            dimension_semantics=("parallel",)),
    )(grad_p, pos_p, pert_p, sigma_p)
    return loss_p[0, :N]


def make_params(key, hidden_dim=HIDDEN_DIM):
    ks = jax.random.split(key, 5)
    sigmas = jnp.asarray(
        np.exp(np.linspace(np.log(SIGMA_BEGIN), np.log(SIGMA_END), NUM_NOISE_LEVEL)),
        dtype=jnp.float32)
    # GaussianFourierProjection.W ~ N(0,1)*scale, scale=1.  The 2*pi factor and
    # the [sin, cos] duplication (+pi/2 phase on the cos half) are folded in
    # once here, so the kernel evaluates a single fused sin over (2H, TE).
    w_fourier = jax.random.normal(ks[2], (hidden_dim,), jnp.float32)
    wf2_2pi = (jnp.concatenate([w_fourier, w_fourier])
               .reshape(2 * hidden_dim, 1).astype(jnp.float32) * TWO_PI)
    phase = jnp.concatenate(
        [jnp.zeros((hidden_dim,), jnp.float32),
         jnp.full((hidden_dim,), np.pi / 2.0, jnp.float32)]).reshape(2 * hidden_dim, 1)
    return {
        "node_emb": 0.1 * jax.random.normal(ks[0], (100, hidden_dim), jnp.float32),
        "edge_emb": 0.1 * jax.random.normal(ks[1], (100, hidden_dim), jnp.float32),
        "w_fourier": w_fourier,        # kept for the pure-JAX reference check
        "wf2_2pi": wf2_2pi,            # (2H, 1)
        "phase": phase,                # (2H, 1)
        # input_mlp: Linear(2H -> H); PyTorch (out, in) = (H, 2H) layout, used
        # directly as the LHS of the transposed-layout matmul W @ [sin;cos].
        "w_input_mlp": 0.1 * jax.random.normal(ks[3], (hidden_dim, 2 * hidden_dim),
                                               jnp.float32),
        "b_input_mlp": 0.01 * jax.random.normal(ks[4], (hidden_dim, 1), jnp.float32),
        "sigmas": sigmas,
    }


def equi_distance_score_match_forward(params, data, key):
    pos = data["pos"]                    # (N, 3) float32
    atom_type = data["atom_type"]        # (N,)   int32
    edge_index = data["edge_index"]      # (2, E) int32
    edge_type = data["edge_type"]        # (E,)   int32
    node2graph = data["batch"]           # (N,)   int32
    batch_size = data["batch_size"]

    sigmas = params["sigmas"]
    k_lvl, k_noise = jax.random.split(key, 2)

    # noise level / perturbation (forward-pass semantics; randomness in glue)
    noise_level = jax.random.randint(k_lvl, (batch_size,), 0, sigmas.shape[0])
    used_sigmas = sigmas[noise_level][node2graph][:, None]          # (N, 1)
    coord_noise = jax.random.normal(k_noise, pos.shape, jnp.float32)
    perturbed_pos = pos + coord_noise * used_sigmas                 # (N, 3)

    # gathers + layout plumbing (glue): put E / N on the lane axis
    row, col = edge_index[0], edge_index[1]
    diff_t = (perturbed_pos[row] - perturbed_pos[col]).T            # (3, E)
    node_attr = params["node_emb"][atom_type]                       # (N, H)
    edge_type_emb_t = params["edge_emb"][edge_type].T               # (H, E)

    # hot path 1: Fourier embedding + Linear + gating (Pallas, tiled over E)
    edge_attr_t, d_t = edge_features(
        diff_t, edge_type_emb_t, params["wf2_2pi"], params["phase"],
        params["w_input_mlp"], params["b_input_mlp"])
    edge_attr = edge_attr_t.T                                       # (E, H)
    perturbed_d = d_t.T                                             # (E, 1)

    # TODO(synk): self.wl (kDisGNN) and self.model (GradientGEGNNWL) are external
    # modules whose code is not provided; their per-node 'gradient' output is
    # taken as a synthetic input here instead of being computed.
    gradient = data["gradient"]                                     # (N, 3)

    # hot path 2: score-matching loss (Pallas, lane-dense, tiled over N)
    loss_per_node = node_loss(gradient.T, pos.T, perturbed_pos.T,
                              used_sigmas.T)                        # (N,)

    # scatter_mean over graphs (glue)
    seg_sum = jax.ops.segment_sum(loss_per_node, node2graph, num_segments=batch_size)
    counts = jax.ops.segment_sum(jnp.ones_like(loss_per_node), node2graph,
                                 num_segments=batch_size)
    loss_pos = seg_sum / counts

    loss_dict = {
        "position": loss_pos.mean(),
        "distance": jnp.zeros((1,), jnp.float32),
    }
    return loss_dict, edge_attr, node_attr, perturbed_d


if __name__ == "__main__":
    key = jax.random.PRNGKey(0)
    k_param, k_data, k_run = jax.random.split(key, 3)

    N, E, B, H = 8, 16, 2, HIDDEN_DIM
    kd = jax.random.split(k_data, 6)
    data = {
        "pos": jax.random.normal(kd[0], (N, 3), jnp.float32),
        "atom_type": jax.random.randint(kd[1], (N,), 0, 100),
        "edge_index": jax.random.randint(kd[2], (2, E), 0, N),
        "edge_type": jax.random.randint(kd[3], (E,), 0, 100),
        "batch": jnp.repeat(jnp.arange(B, dtype=jnp.int32), N // B),
        "batch_size": B,
        "gradient": jax.random.normal(kd[4], (N, 3), jnp.float32),
    }
    params = make_params(k_param, H)

    loss_dict, edge_attr, node_attr, perturbed_d = equi_distance_score_match_forward(
        params, data, k_run)
    jax.block_until_ready((loss_dict, edge_attr, node_attr, perturbed_d))

    assert edge_attr.shape == (E, H)
    assert perturbed_d.shape == (E, 1)
    assert node_attr.shape == (N, H)

    # ---- pure-JAX reference check (reproduces forward()'s randomness) ----
    k_lvl, k_noise = jax.random.split(k_run, 2)
    noise_level = jax.random.randint(k_lvl, (B,), 0, params["sigmas"].shape[0])
    used_sigmas = params["sigmas"][noise_level][data["batch"]][:, None]
    coord_noise = jax.random.normal(k_noise, data["pos"].shape, jnp.float32)
    perturbed_pos = data["pos"] + coord_noise * used_sigmas

    row, col = data["edge_index"][0], data["edge_index"][1]
    pdiff = perturbed_pos[row] - perturbed_pos[col]
    d_full = jnp.sqrt(jnp.sum(pdiff * pdiff, axis=-1, keepdims=True))       # (E, 1)
    x_proj = d_full * params["w_fourier"][None, :] * TWO_PI                 # (E, H)
    d_emb = jnp.concatenate([jnp.sin(x_proj), jnp.cos(x_proj)], axis=-1)    # (E, 2H)
    d_lin = jnp.dot(d_emb, params["w_input_mlp"].T,
                    precision=jax.lax.Precision.HIGHEST) + params["b_input_mlp"][:, 0]
    edge_attr_ref = d_lin * params["edge_emb"][data["edge_type"]]           # (E, H)

    target = -1.0 / (used_sigmas * used_sigmas) * (perturbed_pos - data["pos"])
    scores = data["gradient"] * (1.0 / used_sigmas)
    loss_node_ref = 0.5 * jnp.sum((scores - target) ** 2, -1) * used_sigmas[:, 0] ** 2
    seg = jax.ops.segment_sum(loss_node_ref, data["batch"], num_segments=B)
    cnt = jax.ops.segment_sum(jnp.ones_like(loss_node_ref), data["batch"],
                              num_segments=B)
    loss_pos_ref = (seg / cnt).mean()

    assert np.allclose(np.asarray(perturbed_d), np.asarray(d_full),
                       rtol=1e-4, atol=1e-5)
    assert np.allclose(np.asarray(edge_attr), np.asarray(edge_attr_ref),
                       rtol=1e-3, atol=1e-4)
    assert np.allclose(float(loss_dict["position"]), float(loss_pos_ref),
                       rtol=1e-4, atol=1e-5)
    assert np.isfinite(float(loss_dict["position"]))
    assert np.all(np.isfinite(np.asarray(edge_attr)))
    print("KERNEL_OK")
</pallas_src>

<mosaic_0001>
module attributes {stable_mosaic.version = 11 : i64} {
  func.func @edge_feature_kernel(%arg0: i32, %arg1: memref<3x256xf32, #tpu.memory_space<vmem>>, %arg2: memref<32x256xf32, #tpu.memory_space<vmem>>, %arg3: memref<64x1xf32, #tpu.memory_space<vmem>>, %arg4: memref<64x1xf32, #tpu.memory_space<vmem>>, %arg5: memref<32x64xf32, #tpu.memory_space<vmem>>, %arg6: memref<32x1xf32, #tpu.memory_space<vmem>>, %arg7: memref<32x256xf32, #tpu.memory_space<vmem>>, %arg8: memref<1x256xf32, #tpu.memory_space<vmem>>) attributes {dimension_semantics = [#tpu.dimension_semantics<parallel>], iteration_bounds = array<i64: 1>, scalar_prefetch = 0 : i64, scratch_operands = 0 : i64, tpu.core_type = #tpu.core_type<tc>, window_params = [{transform_indices = @transform_0, window_bounds = array<i64: 3, 256>}, {transform_indices = @transform_1, window_bounds = array<i64: 32, 256>}, {pipeline_mode = #tpu.pipeline_mode<synchronous>, transform_indices = @transform_2, window_bounds = array<i64: 64, 1>}, {pipeline_mode = #tpu.pipeline_mode<synchronous>, transform_indices = @transform_3, window_bounds = array<i64: 64, 1>}, {pipeline_mode = #tpu.pipeline_mode<synchronous>, transform_indices = @transform_4, window_bounds = array<i64: 32, 64>}, {pipeline_mode = #tpu.pipeline_mode<synchronous>, transform_indices = @transform_5, window_bounds = array<i64: 32, 1>}, {transform_indices = @transform_6, window_bounds = array<i64: 32, 256>}, {transform_indices = @transform_7, window_bounds = array<i64: 1, 256>}]} {
    %c0 = arith.constant 0 : index
    %c0_0 = arith.constant 0 : index
    %0 = vector.load %arg1[%c0, %c0_0] : memref<3x256xf32, #tpu.memory_space<vmem>>, vector<3x256xf32>
    %1 = vector.extract_strided_slice %0 {offsets = [0, 0], sizes = [1, 256], strides = [1, 1]} : vector<3x256xf32> to vector<1x256xf32>
    %2 = vector.extract_strided_slice %0 {offsets = [0, 0], sizes = [1, 256], strides = [1, 1]} : vector<3x256xf32> to vector<1x256xf32>
    %3 = arith.mulf %1, %2 : vector<1x256xf32>
    %4 = vector.extract_strided_slice %0 {offsets = [1, 0], sizes = [1, 256], strides = [1, 1]} : vector<3x256xf32> to vector<1x256xf32>
    %5 = vector.extract_strided_slice %0 {offsets = [1, 0], sizes = [1, 256], strides = [1, 1]} : vector<3x256xf32> to vector<1x256xf32>
    %6 = arith.mulf %4, %5 : vector<1x256xf32>
    %7 = arith.addf %3, %6 : vector<1x256xf32>
    %8 = vector.extract_strided_slice %0 {offsets = [2, 0], sizes = [1, 256], strides = [1, 1]} : vector<3x256xf32> to vector<1x256xf32>
    %9 = vector.extract_strided_slice %0 {offsets = [2, 0], sizes = [1, 256], strides = [1, 1]} : vector<3x256xf32> to vector<1x256xf32>
    %10 = arith.mulf %8, %9 : vector<1x256xf32>
    %11 = arith.addf %7, %10 : vector<1x256xf32>
    %12 = math.sqrt %11 : vector<1x256xf32>
    %c0_1 = arith.constant 0 : index
    %c0_2 = arith.constant 0 : index
    %13 = vector.load %arg8[%c0_1, %c0_2] : memref<1x256xf32, #tpu.memory_space<vmem>>, vector<1x256xf32>
    tpu.vector_store %arg8[%c0_1, %c0_2], %12 {strides = array<i32>} : memref<1x256xf32, #tpu.memory_space<vmem>>, vector<1x256xf32>,
    %c0_3 = arith.constant 0 : index
    %c0_4 = arith.constant 0 : index
    %14 = vector.load %arg3[%c0_3, %c0_4] : memref<64x1xf32, #tpu.memory_space<vmem>>, vector<64x1xf32>
    %15 = vector.broadcast %12 : vector<1x256xf32> to vector<64x256xf32>
    %16 = vector.broadcast %14 : vector<64x1xf32> to vector<64x256xf32>
    %17 = arith.mulf %15, %16 : vector<64x256xf32>
    %c0_5 = arith.constant 0 : index
    %c0_6 = arith.constant 0 : index
    %18 = vector.load %arg4[%c0_5, %c0_6] : memref<64x1xf32, #tpu.memory_space<vmem>>, vector<64x1xf32>
    %19 = vector.broadcast %18 : vector<64x1xf32> to vector<64x256xf32>
    %20 = arith.addf %17, %19 : vector<64x256xf32>
    %21 = math.sin %20 : vector<64x256xf32>
    %c0_7 = arith.constant 0 : index
    %c0_8 = arith.constant 0 : index
    %22 = vector.load %arg5[%c0_7, %c0_8] : memref<32x64xf32, #tpu.memory_space<vmem>>, vector<32x64xf32>
    %cst = arith.constant dense<0.000000e+00> : vector<32x256xf32>
    %23 = tpu.matmul %22, %21, %cst {dimension_numbers = #tpu.dot_dimension_numbers<[1], [0], [0], [1], [0, 0, 1, 1], [], []>} : vector<32x64xf32>, vector<64x256xf32>, vector<32x256xf32> -> vector<32x256xf32>
    %c0_9 = arith.constant 0 : index
    %c0_10 = arith.constant 0 : index
    %24 = vector.load %arg6[%c0_9, %c0_10] : memref<32x1xf32, #tpu.memory_space<vmem>>, vector<32x1xf32>
    %25 = vector.broadcast %24 : vector<32x1xf32> to vector<32x256xf32>
    %26 = arith.addf %23, %25 : vector<32x256xf32>
    %c0_11 = arith.constant 0 : index
    %c0_12 = arith.constant 0 : index
    %27 = vector.load %arg2[%c0_11, %c0_12] : memref<32x256xf32, #tpu.memory_space<vmem>>, vector<32x256xf32>
    %28 = arith.mulf %26, %27 : vector<32x256xf32>
    %c0_13 = arith.constant 0 : index
    %c0_14 = arith.constant 0 : index
    %29 = vector.load %arg7[%c0_13, %c0_14] : memref<32x256xf32, #tpu.memory_space<vmem>>, vector<32x256xf32>
    tpu.vector_store %arg7[%c0_13, %c0_14], %28 {strides = array<i32>} : memref<32x256xf32, #tpu.memory_space<vmem>>, vector<32x256xf32>,
    return
  }
  func.func @transform_0(%arg0: i32) -> (i32, i32) {
    %c0_i32 = arith.constant 0 : i32
    %c0_i32_0 = arith.constant 0 : i32
    return %c0_i32, %arg0 : i32, i32
  }
  func.func @transform_1(%arg0: i32) -> (i32, i32) {
    %c0_i32 = arith.constant 0 : i32
    %c0_i32_0 = arith.constant 0 : i32
    return %c0_i32, %arg0 : i32, i32
  }
  func.func @transform_2(%arg0: i32) -> (i32, i32) {
    %c0_i32 = arith.constant 0 : i32
    %c0_i32_0 = arith.constant 0 : i32
    %c0_i32_1 = arith.constant 0 : i32
    return %c0_i32, %c0_i32_0 : i32, i32
  }
  func.func @transform_3(%arg0: i32) -> (i32, i32) {
    %c0_i32 = arith.constant 0 : i32
    %c0_i32_0 = arith.constant 0 : i32
    %c0_i32_1 = arith.constant 0 : i32
    return %c0_i32, %c0_i32_0 : i32, i32
  }
  func.func @transform_4(%arg0: i32) -> (i32, i32) {
    %c0_i32 = arith.constant 0 : i32
    %c0_i32_0 = arith.constant 0 : i32
    %c0_i32_1 = arith.constant 0 : i32
    return %c0_i32, %c0_i32_0 : i32, i32
  }
  func.func @transform_5(%arg0: i32) -> (i32, i32) {
    %c0_i32 = arith.constant 0 : i32
    %c0_i32_0 = arith.constant 0 : i32
    %c0_i32_1 = arith.constant 0 : i32
    return %c0_i32, %c0_i32_0 : i32, i32
  }
  func.func @transform_6(%arg0: i32) -> (i32, i32) {
    %c0_i32 = arith.constant 0 : i32
    %c0_i32_0 = arith.constant 0 : i32
    return %c0_i32, %arg0 : i32, i32
  }
  func.func @transform_7(%arg0: i32) -> (i32, i32) {
    %c0_i32 = arith.constant 0 : i32
    %c0_i32_0 = arith.constant 0 : i32
    return %c0_i32, %arg0 : i32, i32
  }
}

</mosaic_0001>

<llo_original>
// kernel: tpu_custom_call.1
$region0: #{tpu_custom_call.1}
  #allocation0 [shape = 'u32[]', space=smem, size = 0x4, offset = 0x4, fixed_abs, tag = 'smem constant byte address 0x4 - core index']
  #allocation1 [shape = 'u32[144,128]{1,0:T(1,128)}', space=vmem, size = 0x12000, scoped, tag = 'internal scratch']
  %s0 = inlined_call_operand.vmem [shape: f32[3,256], index: 0, kind: input, shape index: {}]
  %s1 = inlined_call_operand.vmem [shape: f32[32,256], index: 1, kind: input, shape index: {}]
  %s2 = inlined_call_operand.vmem [shape: f32[64,1], index: 2, kind: input, shape index: {}]
  %s3 = inlined_call_operand.vmem [shape: f32[64,1], index: 3, kind: input, shape index: {}]
  %s4 = inlined_call_operand.vmem [shape: f32[32,64], index: 4, kind: input, shape index: {}]
  %s5 = inlined_call_operand.vmem [shape: f32[32,1], index: 5, kind: input, shape index: {}]
  %s6 = inlined_call_operand.hbm [shape: f32[32,256], index: 6, kind: output, shape index: {0}]
  %s7 = inlined_call_operand.hbm [shape: f32[1,256], index: 7, kind: output, shape index: {1}]
  %8 = xla_tuple %s6, %s7
  %s9 = sld [smem:[#allocation0]]
  $region42: #{tpu_custom_call.1} parent=0
    _
  %s11 = ssub.s32 1, %s9
  %s12 = scalar_select 0, %s11, %s9
  $region1: #{tpu_custom_call.1} parent=0
    #allocation2 [shape = 'u8[32768]{0}', space=vmem, size = 0x8000, scoped, tag = 'output window, operand 0, single buffered']
    #allocation3 [shape = 's32[1]{0}', space=sflag, size = 0x4, scoped, tag = 'scoped memory for tpu_custom_call.1']
    #allocation4 [shape = 'u8[1024]{0}', space=vmem, size = 0x400, scoped, tag = 'output window, operand 1, single buffered']
    #allocation5 [shape = 's32[1]{0}', space=sflag, size = 0x4, scoped, tag = 'scoped memory for tpu_custom_call.1']
    %13 = vsyncpa [#allocation3], 0
    %14 = vsyncpa [#allocation5], 0
    // Predicated region
    $region2: #{tpu_custom_call.1} parent=1 // pred_check
      _
    $region3: #{tpu_custom_call.1} parent=1 // pred_check_branch
      %16 = sbr.rel (0) target = $region5
    $region4: #{tpu_custom_call.1} parent=1 // pred_region
      _
    $region5: #{tpu_custom_call.1} parent=1 // pred_fallthru
      _
    // Predicated region
    $region6: #{tpu_custom_call.1} parent=1 // pred_check
      _
    $region7: #{tpu_custom_call.1} parent=1 // pred_check_branch
      %18 = sbr.rel (0) target = $region9
    $region8: #{tpu_custom_call.1} parent=1 // pred_region
      _
    $region9: #{tpu_custom_call.1} parent=1 // pred_fallthru
      _
    // Predicated region
    $region10: #{tpu_custom_call.1} parent=1 // pred_check
      _
    $region11: #{tpu_custom_call.1} parent=1 // pred_check_branch
      %20 = sbr.rel (0) target = $region13
    $region12: #{tpu_custom_call.1} parent=1 // pred_region
      _
    $region13: #{tpu_custom_call.1} parent=1 // pred_fallthru
      _
    // Predicated region
    $region14: #{tpu_custom_call.1} parent=1 // pred_check
      _
    $region15: #{tpu_custom_call.1} parent=1 // pred_check_branch
      %22 = sbr.rel (0) target = $region17
    $region16: #{tpu_custom_call.1} parent=1 // pred_region
      _
    $region17: #{tpu_custom_call.1} parent=1 // pred_fallthru
      _
    // Predicated region
    $region18: #{tpu_custom_call.1} parent=1 // pred_check
      _
    $region19: #{tpu_custom_call.1} parent=1 // pred_check_branch
      %24 = sbr.rel (0) target = $region21
    $region20: #{tpu_custom_call.1} parent=1 // pred_region
      _
    $region21: #{tpu_custom_call.1} parent=1 // pred_fallthru
      _
    // Predicated region
    $region22: #{tpu_custom_call.1} parent=1 // pred_check
      _
    $region23: #{tpu_custom_call.1} parent=1 // pred_check_branch
      %26 = sbr.rel (0) target = $region25
    $region24: #{tpu_custom_call.1} parent=1 // pred_region
      _
    $region25: #{tpu_custom_call.1} parent=1 // pred_fallthru
      _
    %v27 = vld [vmem:[%s0] sm:$0x77]
    %v28 = vmul.f32 %v27, %v27
    %v30 = vrot.slane %v28, 5
    %v31 = vrot.slane %v30, 4
    %v33 = vadd.f32 %v28, %v31
    %v34 = vrot.slane %v28, 6
    %v35 = vrot.slane %v34, 4
    %v37 = vadd.f32 %v33, %v35
    %v38 = vrsqrt.pop %v37
    %v39 = vmul.f32 %v37, %v38
    %vm40 = vcmp.eq.f32.partialorder %v37, inf
    %v41 = vsel %vm40, %v37, %v39
    %vm42 = vcmp.eq.f32.partialorder %v37, 0.0
    %v43 = vand.u32 %v37, 2147483648
    %v44 = vsel %vm42, %v43, %v41
    %v47 = vunpack.c.l.s4 1966171168
    %v48 = vunpack.c.0.s8 %v47
    %v49 = vlaneseq
    %v50 = vshrl.u32 %v49, 7
    %v51 = vsub.s32 %v48, %v50
    %v52 = vrot.slane %v44, %v51
    %v54 = vunpack.c.l.s4 1966171168
    %v55 = vunpack.c.0.s8 %v54
    %v56 = vlaneseq
    %v57 = vshrl.u32 %v56, 7
    %v58 = vsub.s32 %v55, %v57
    %v59 = vrot.slane %v52, %v58
    %v61 = vlaneseq
    %vm62 = vcmp.ge.s32.totalorder %v61, 0
    %vm63 = vcmp.lt.s32.totalorder %v61, 256
    %vm64 = vmand %vm62, %vm63
    %65 = vst.msk [vmem:[#allocation4] sm:$0x3] %vm64, %v59
    %v66 = vld [vmem:[%s2] sm:$0xff]
    %v67 = vld [vmem:[%s2 + $0x8] sm:$0xff]
    %v68 = vld [vmem:[%s2 + $0x10] sm:$0xff]
    %v69 = vld [vmem:[%s2 + $0x18] sm:$0xff]
    %v70 = vld [vmem:[%s2 + $0x20] sm:$0xff]
    %v71 = vld [vmem:[%s2 + $0x28] sm:$0xff]
    %v72 = vld [vmem:[%s2 + $0x30] sm:$0xff]
    %v73 = vld [vmem:[%s2 + $0x38] sm:$0xff]
    %v74 = vlaneseq
    %v75 = vshrl.u32 %v74, 7
    %v76 = vsub.s32 0, %v75
    %v77 = vrot.slane %v44, %v76
    %v78 = vlaneseq
    %v79 = vshrl.u32 %v78, 7
    %v80 = vsub.s32 4, %v79
    %v81 = vrot.slane %v44, %v80
    %v84 = vlaneseq
    %v85 = vshrl.u32 %v84, 7
    %v86 = vsub.s32 0, %v85
    %v87 = vrot.slane %v77, %v86
    %v88 = vlaneseq
    %v89 = vshrl.u32 %v88, 7
    %v90 = vsub.s32 0, %v89
    %v91 = vrot.slane %v81, %v90
    %93 = vset.pattern.permute.xlu0 0
    %94 = vperm.xlu0 %93, %v66
    %v95 = vpop.permute.xlu0 %94
    %98 = vset.pattern.permute.xlu0 0
    %99 = vperm.xlu0 %98, %v67
    %v100 = vpop.permute.xlu0 %99
    %103 = vset.pattern.permute.xlu0 0
    %104 = vperm.xlu0 %103, %v68
    %v105 = vpop.permute.xlu0 %104
    %108 = vset.pattern.permute.xlu0 0
    %109 = vperm.xlu0 %108, %v69
    %v110 = vpop.permute.xlu0 %109
    %113 = vset.pattern.permute.xlu0 0
    %114 = vperm.xlu0 %113, %v70
    %v115 = vpop.permute.xlu0 %114
    %118 = vset.pattern.permute.xlu0 0
    %119 = vperm.xlu0 %118, %v71
    %v120 = vpop.permute.xlu0 %119
    %123 = vset.pattern.permute.xlu0 0
    %124 = vperm.xlu0 %123, %v72
    %v125 = vpop.permute.xlu0 %124
    %128 = vset.pattern.permute.xlu0 0
    %129 = vperm.xlu0 %128, %v73
    %v130 = vpop.permute.xlu0 %129
    %v132 = vmul.f32 %v87, %v95
    %v133 = vmul.f32 %v91, %v95
    %v134 = vmul.f32 %v87, %v100
    %v135 = vmul.f32 %v91, %v100
    %v136 = vmul.f32 %v87, %v105
    %v137 = vmul.f32 %v91, %v105
    %v138 = vmul.f32 %v87, %v110
    %v139 = vmul.f32 %v91, %v110
    %v140 = vmul.f32 %v87, %v115
    %v141 = vmul.f32 %v91, %v115
    %v142 = vmul.f32 %v87, %v120
    %v143 = vmul.f32 %v91, %v120
    %v144 = vmul.f32 %v87, %v125
    %v145 = vmul.f32 %v91, %v125
    %v146 = vmul.f32 %v87, %v130
    %v147 = vmul.f32 %v91, %v130
    %v148 = vld [vmem:[%s3] sm:$0xff]
    %v149 = vld [vmem:[%s3 + $0x8] sm:$0xff]
    %v150 = vld [vmem:[%s3 + $0x10] sm:$0xff]
    %v151 = vld [vmem:[%s3 + $0x18] sm:$0xff]
    %v152 = vld [vmem:[%s3 + $0x20] sm:$0xff]
    %v153 = vld [vmem:[%s3 + $0x28] sm:$0xff]
    %v154 = vld [vmem:[%s3 + $0x30] sm:$0xff]
    %v155 = vld [vmem:[%s3 + $0x38] sm:$0xff]
    %157 = vset.pattern.permute.xlu0 0
    %158 = vperm.xlu0 %157, %v148
    %v159 = vpop.permute.xlu0 %158
    %162 = vset.pattern.permute.xlu0 0
    %163 = vperm.xlu0 %162, %v149
    %v164 = vpop.permute.xlu0 %163
    %167 = vset.pattern.permute.xlu0 0
    %168 = vperm.xlu0 %167, %v150
    %v169 = vpop.permute.xlu0 %168
    %172 = vset.pattern.permute.xlu0 0
    %173 = vperm.xlu0 %172, %v151
    %v174 = vpop.permute.xlu0 %173
    %177 = vset.pattern.permute.xlu0 0
    %178 = vperm.xlu0 %177, %v152
    %v179 = vpop.permute.xlu0 %178
    %182 = vset.pattern.permute.xlu0 0
    %183 = vperm.xlu0 %182, %v153
    %v184 = vpop.permute.xlu0 %183
    %187 = vset.pattern.permute.xlu0 0
    %188 = vperm.xlu0 %187, %v154
    %v189 = vpop.permute.xlu0 %188
    %192 = vset.pattern.permute.xlu0 0
    %193 = vperm.xlu0 %192, %v155
    %v194 = vpop.permute.xlu0 %193
    %v196 = vadd.f32 %v132, %v159
    %v197 = vadd.f32 %v133, %v159
    %v198 = vadd.f32 %v134, %v164
    %v199 = vadd.f32 %v135, %v164
    %v200 = vadd.f32 %v136, %v169
    %v201 = vadd.f32 %v137, %v169
    %v202 = vadd.f32 %v138, %v174
    %v203 = vadd.f32 %v139, %v174
    %v204 = vadd.f32 %v140, %v179
    %v205 = vadd.f32 %v141, %v179
    %v206 = vadd.f32 %v142, %v184
    %v207 = vadd.f32 %v143, %v184
    %v208 = vadd.f32 %v144, %v189
    %v209 = vadd.f32 %v145, %v189
    %v210 = vadd.f32 %v146, %v194
    %v211 = vadd.f32 %v147, %v194
    %v212 = vand.u32 2147483647, %v196
    %vm213 = vcmp.le.f32.partialorder %v212, 0.7853982
    %vm214 = vcmp.lt.s32.totalorder %v196, 0
    %v215 = vand.u32 %v196, 2139095040
    %v216 = vshrl.u32 %v215, 23
    %v217 = vsub.s32 %v216, 127
    %v218 = vand.u32 2147483647, %v196
    %v219 = vand.u32 %v218, 8388607
    %v220 = vor.u32 %v219, 8388608
    %v221 = vsub.s32 0, %v220
    %v222 = vadd.s32 %v217, 1
    %vm223 = vcmp.gt.s32.totalorder %v222, 0
    %v224 = vsel %vm223, %v222, 0
    %v225 = vshrl.u32 %v224, 5
    %v226 = vand.u32 %v224, 31
    %v227 = vsub.s32 32, %v226
    %v228 = vshrl.u32 683565275, %v227
    %v229 = vshll.u32 683565275, %v226
    %v230 = vshrl.u32 2475754826, %v227
    %v231 = vor.u32 %v229, %v230
    %v232 = vshll.u32 2475754826, %v226
    %v233 = vshrl.u32 2131351028, %v227
    %v234 = vor.u32 %v232, %v233
    %v235 = vshll.u32 2131351028, %v226
    %v236 = vshrl.u32 2102212464, %v227
    %v237 = vor.u32 %v235, %v236
    %v238 = vshll.u32 2102212464, %v226
    %v239 = vshrl.u32 920167782, %v227
    %v240 = vor.u32 %v238, %v239
    %v241 = vshll.u32 920167782, %v226
    %v242 = vshrl.u32 1326507024, %v227
    %v243 = vor.u32 %v241, %v242
    %vm244 = vcmp.lt.s32.totalorder %v225, 1
    %vm245 = vcmp.lt.s32.totalorder %v225, 2
    %vm246 = vcmp.lt.s32.totalorder %v225, 3
    %vm247 = vcmp.lt.s32.totalorder %v225, 4
    %v248 = vsel %vm244, %v228, %v231
    %v249 = vsel %vm247, %v237, 2102212464
    %v250 = vsel %vm246, %v234, %v249
    %v251 = vsel %vm245, %v248, %v250
    %v252 = vsel %vm244, %v231, %v234
    %v253 = vsel %vm247, %v240, 920167782
    %v254 = vsel %vm246, %v237, %v253
    %v255 = vsel %vm245, %v252, %v254
    %v256 = vsel %vm244, %v234, %v237
    %v257 = vsel %vm247, %v243, 1326507024
    %v258 = vsel %vm246, %v240, %v257
    %v259 = vsel %vm245, %v256, %v258
    %v260 = vshll.u32 %v220, 8
    %v261 = vmul.u32.u64.compose %v260, %v259
    %v262 = vextract.low.u32 %v261
    %v263 = vextract.high.u32 %v261
    %v264 = vmul.u32.u64.compose %v260, %v255
    %v265 = vextract.low.u32 %v264
    %v266 = vextract.high.u32 %v264
    %v267 = vmul.u32 %v260, %v251
    %v268 = vadd.s32 %v263, %v265
    %vm269 = vc.u32 %v263, %v265
    %v270 = vadd.s32 %v266, 1
    %v271 = vsel %vm269, %v270, %v266
    %v272 = vadd.s32 %v267, %v271
    %v273 = vadd.s32 %v272, 536870912
    %v274 = vshrl.u32 %v273, 30
    %v275 = vshll.u32 %v274, 30
    %v276 = vsub.s32 %v272, %v275
    %vm277 = vcmp.lt.s32.totalorder %v276, 0
    %v278 = vsub.s32 0, %v276
    %v279 = vsel %vm277, %v278, %v276
    %v280 = vclz %v279
    %v281 = vsub.s32 %v280, 2
    %vm282 = vcmp.gt.s32.totalorder 0, %v281
    %v283 = vsel %vm282, 0, %v281
    %v284 = vsub.s32 32, %v283
    %v285 = vshll.u32 %v276, %v283
    %v286 = vshrl.u32 %v268, %v284
    %v287 = vor.u32 %v285, %v286
    %v288 = vsub.s32 4294967266, %v283
    %v289 = vadd.s32 %v288, 127
    %v290 = vshll.u32 %v289, 23
    %v291 = vor.u32 4788187, %v290
    %v292 = vand.u32 2147483647, %v291
    %v294 = vcvt.s32.f32 %v287
    %v295 = vmul.f32 %v294, %v292
    %v296 = vxor.u32 %v295, 2147483648
    %v297 = vsel %vm214, %v296, %v295
    %v298 = vsub.s32 4, %v274
    %v299 = vsel %vm214, %v298, %v274
    %v300 = vsel %vm213, %v196, %v297
    %v301 = vsel %vm213, 0, %v299
    %v302 = vcosq.f32.pop %v300
    %v303 = vsinq.f32.pop %v300
    %vm304 = vweird.f32 %v196
    %v305 = vadd.s32 %v301, 3
    %v306 = vand.u32 %v305, 3
    %vm307 = vcmp.lt.s32.totalorder %v306, 2
    %vm308 = vcmp.eq.s32.totalorder %v306, 0
    %v309 = vxor.u32 %v303, 2147483648
    %v310 = vsel %vm308, %v302, %v309
    %vm311 = vcmp.eq.s32.totalorder %v306, 2
    %v312 = vxor.u32 %v302, 2147483648
    %v313 = vsel %vm311, %v312, %v303
    %v314 = vsel %vm307, %v310, %v313
    %v315 = vsel %vm304, nan, %v314
    %v316 = vand.u32 2147483647, %v197
    %vm317 = vcmp.le.f32.partialorder %v316, 0.7853982
    %vm318 = vcmp.lt.s32.totalorder %v197, 0
    %v319 = vand.u32 %v197, 2139095040
    %v320 = vshrl.u32 %v319, 23
    %v321 = vsub.s32 %v320, 127
    %v322 = vand.u32 2147483647, %v197
    %v323 = vand.u32 %v322, 8388607
    %v324 = vor.u32 %v323, 8388608
    %v325 = vsub.s32 0, %v324
    %v326 = vadd.s32 %v321, 1
    %vm327 = vcmp.gt.s32.totalorder %v326, 0
    %v328 = vsel %vm327, %v326, 0
    %v329 = vshrl.u32 %v328, 5
    %v330 = vand.u32 %v328, 31
    %v331 = vsub.s32 32, %v330
    %v332 = vshrl.u32 683565275, %v331
    %v333 = vshll.u32 683565275, %v330
    %v334 = vshrl.u32 2475754826, %v331
    %v335 = vor.u32 %v333, %v334
    %v336 = vshll.u32 2475754826, %v330
    %v337 = vshrl.u32 2131351028, %v331
    %v338 = vor.u32 %v336, %v337
    %v339 = vshll.u32 2131351028, %v330
    %v340 = vshrl.u32 2102212464, %v331
    %v341 = vor.u32 %v339, %v340
    %v342 = vshll.u32 2102212464, %v330
    %v343 = vshrl.u32 920167782, %v331
    %v344 = vor.u32 %v342, %v343
    %v345 = vshll.u32 920167782, %v330
    %v346 = vshrl.u32 1326507024, %v331
    %v347 = vor.u32 %v345, %v346
    %vm348 = vcmp.lt.s32.totalorder %v329, 1
    %vm349 = vcmp.lt.s32.totalorder %v329, 2
    %vm350 = vcmp.lt.s32.totalorder %v329, 3
    %vm351 = vcmp.lt.s32.totalorder %v329, 4
    %v352 = vsel %vm348, %v332, %v335
    %v353 = vsel %vm351, %v341, 2102212464
    %v354 = vsel %vm350, %v338, %v353
    %v355 = vsel %vm349, %v352, %v354
    %v356 = vsel %vm348, %v335, %v338
    %v357 = vsel %vm351, %v344, 920167782
    %v358 = vsel %vm350, %v341, %v357
    %v359 = vsel %vm349, %v356, %v358
    %v360 = vsel %vm348, %v338, %v341
    %v361 = vsel %vm351, %v347, 1326507024
    %v362 = vsel %vm350, %v344, %v361
    %v363 = vsel %vm349, %v360, %v362
    %v364 = vshll.u32 %v324, 8
    %v365 = vmul.u32.u64.compose %v364, %v363
    %v366 = vextract.low.u32 %v365
    %v367 = vextract.high.u32 %v365
    %v368 = vmul.u32.u64.compose %v364, %v359
    %v369 = vextract.low.u32 %v368
    %v370 = vextract.high.u32 %v368
    %v371 = vmul.u32 %v364, %v355
    %v372 = vadd.s32 %v367, %v369
    %vm373 = vc.u32 %v367, %v369
    %v374 = vadd.s32 %v370, 1
    %v375 = vsel %vm373, %v374, %v370
    %v376 = vadd.s32 %v371, %v375
    %v377 = vadd.s32 %v376, 536870912
    %v378 = vshrl.u32 %v377, 30
    %v379 = vshll.u32 %v378, 30
    %v380 = vsub.s32 %v376, %v379
    %vm381 = vcmp.lt.s32.totalorder %v380, 0
    %v382 = vsub.s32 0, %v380
    %v383 = vsel %vm381, %v382, %v380
    %v384 = vclz %v383
    %v385 = vsub.s32 %v384, 2
    %vm386 = vcmp.gt.s32.totalorder 0, %v385
    %v387 = vsel %vm386, 0, %v385
    %v388 = vsub.s32 32, %v387
    %v389 = vshll.u32 %v380, %v387
    %v390 = vshrl.u32 %v372, %v388
    %v391 = vor.u32 %v389, %v390
    %v392 = vsub.s32 4294967266, %v387
    %v393 = vadd.s32 %v392, 127
    %v394 = vshll.u32 %v393, 23
    %v395 = vor.u32 4788187, %v394
    %v396 = vand.u32 2147483647, %v395
    %v398 = vcvt.s32.f32 %v391
    %v399 = vmul.f32 %v398, %v396
    %v400 = vxor.u32 %v399, 2147483648
    %v401 = vsel %vm318, %v400, %v399
    %v402 = vsub.s32 4, %v378
    %v403 = vsel %vm318, %v402, %v378
    %v404 = vsel %vm317, %v197, %v401
    %v405 = vsel %vm317, 0, %v403
    %v406 = vcosq.f32.pop %v404
    %v407 = vsinq.f32.pop %v404
    %vm408 = vweird.f32 %v197
    %v409 = vadd.s32 %v405, 3
    %v410 = vand.u32 %v409, 3
    %vm411 = vcmp.lt.s32.totalorder %v410, 2
    %vm412 = vcmp.eq.s32.totalorder %v410, 0
    %v413 = vxor.u32 %v407, 2147483648
    %v414 = vsel %vm412, %v406, %v413
    %vm415 = vcmp.eq.s32.totalorder %v410, 2
    %v416 = vxor.u32 %v406, 2147483648
    %v417 = vsel %vm415, %v416, %v407
    %v418 = vsel %vm411, %v414, %v417
    %v419 = vsel %vm408, nan, %v418
    %v420 = vand.u32 2147483647, %v198
    %vm421 = vcmp.le.f32.partialorder %v420, 0.7853982
    %vm422 = vcmp.lt.s32.totalorder %v198, 0
    %v423 = vand.u32 %v198, 2139095040
    %v424 = vshrl.u32 %v423, 23
    %v425 = vsub.s32 %v424, 127
    %v426 = vand.u32 2147483647, %v198
    %v427 = vand.u32 %v426, 8388607
    %v428 = vor.u32 %v427, 8388608
    %v429 = vsub.s32 0, %v428
    %v430 = vadd.s32 %v425, 1
    %vm431 = vcmp.gt.s32.totalorder %v430, 0
    %v432 = vsel %vm431, %v430, 0
    %v433 = vshrl.u32 %v432, 5
    %v434 = vand.u32 %v432, 31
    %v435 = vsub.s32 32, %v434
    %v436 = vshrl.u32 683565275, %v435
    %v437 = vshll.u32 683565275, %v434
    %v438 = vshrl.u32 2475754826, %v435
    %v439 = vor.u32 %v437, %v438
    %v440 = vshll.u32 2475754826, %v434
    %v441 = vshrl.u32 2131351028, %v435
    %v442 = vor.u32 %v440, %v441
    %v443 = vshll.u32 2131351028, %v434
    %v444 = vshrl.u32 2102212464, %v435
    %v445 = vor.u32 %v443, %v444
    %v446 = vshll.u32 2102212464, %v434
    %v447 = vshrl.u32 920167782, %v435
    %v448 = vor.u32 %v446, %v447
    %v449 = vshll.u32 920167782, %v434
    %v450 = vshrl.u32 1326507024, %v435
    %v451 = vor.u32 %v449, %v450
    %vm452 = vcmp.lt.s32.totalorder %v433, 1
    %vm453 = vcmp.lt.s32.totalorder %v433, 2
    %vm454 = vcmp.lt.s32.totalorder %v433, 3
    %vm455 = vcmp.lt.s32.totalorder %v433, 4
    %v456 = vsel %vm452, %v436, %v439
    %v457 = vsel %vm455, %v445, 2102212464
    %v458 = vsel %vm454, %v442, %v457
    %v459 = vsel %vm453, %v456, %v458
    %v460 = vsel %vm452, %v439, %v442
    %v461 = vsel %vm455, %v448, 920167782
    %v462 = vsel %vm454, %v445, %v461
    %v463 = vsel %vm453, %v460, %v462
    %v464 = vsel %vm452, %v442, %v445
    %v465 = vsel %vm455, %v451, 1326507024
    %v466 = vsel %vm454, %v448, %v465
    %v467 = vsel %vm453, %v464, %v466
    %v468 = vshll.u32 %v428, 8
    %v469 = vmul.u32.u64.compose %v468, %v467
    %v470 = vextract.low.u32 %v469
    %v471 = vextract.high.u32 %v469
    %v472 = vmul.u32.u64.compose %v468, %v463
    %v473 = vextract.low.u32 %v472
    %v474 = vextract.high.u32 %v472
    %v475 = vmul.u32 %v468, %v459
    %v476 = vadd.s32 %v471, %v473
    %vm477 = vc.u32 %v471, %v473
    %v478 = vadd.s32 %v474, 1
    %v479 = vsel %vm477, %v478, %v474
    %v480 = vadd.s32 %v475, %v479
    %v481 = vadd.s32 %v480, 536870912
    %v482 = vshrl.u32 %v481, 30
    %v483 = vshll.u32 %v482, 30
    %v484 = vsub.s32 %v480, %v483
    %vm485 = vcmp.lt.s32.totalorder %v484, 0
    %v486 = vsub.s32 0, %v484
    %v487 = vsel %vm485, %v486, %v484
    %v488 = vclz %v487
    %v489 = vsub.s32 %v488, 2
    %vm490 = vcmp.gt.s32.totalorder 0, %v489
    %v491 = vsel %vm490, 0, %v489
    %v492 = vsub.s32 32, %v491
    %v493 = vshll.u32 %v484, %v491
    %v494 = vshrl.u32 %v476, %v492
    %v495 = vor.u32 %v493, %v494
    %v496 = vsub.s32 4294967266, %v491
    %v497 = vadd.s32 %v496, 127
    %v498 = vshll.u32 %v497, 23
    %v499 = vor.u32 4788187, %v498
    %v500 = vand.u32 2147483647, %v499
    %v502 = vcvt.s32.f32 %v495
    %v503 = vmul.f32 %v502, %v500
    %v504 = vxor.u32 %v503, 2147483648
    %v505 = vsel %vm422, %v504, %v503
    %v506 = vsub.s32 4, %v482
    %v507 = vsel %vm422, %v506, %v482
    %v508 = vsel %vm421, %v198, %v505
    %v509 = vsel %vm421, 0, %v507
    %v510 = vcosq.f32.pop %v508
    %v511 = vsinq.f32.pop %v508
    %vm512 = vweird.f32 %v198
    %v513 = vadd.s32 %v509, 3
    %v514 = vand.u32 %v513, 3
    %vm515 = vcmp.lt.s32.totalorder %v514, 2
    %vm516 = vcmp.eq.s32.totalorder %v514, 0
    %v517 = vxor.u32 %v511, 2147483648
    %v518 = vsel %vm516, %v510, %v517
    %vm519 = vcmp.eq.s32.totalorder %v514, 2
    %v520 = vxor.u32 %v510, 2147483648
    %v521 = vsel %vm519, %v520, %v511
    %v522 = vsel %vm515, %v518, %v521
    %v523 = vsel %vm512, nan, %v522
    %v524 = vand.u32 2147483647, %v199
    %vm525 = vcmp.le.f32.partialorder %v524, 0.7853982
    %vm526 = vcmp.lt.s32.totalorder %v199, 0
    %v527 = vand.u32 %v199, 2139095040
    %v528 = vshrl.u32 %v527, 23
    %v529 = vsub.s32 %v528, 127
    %v530 = vand.u32 2147483647, %v199
    %v531 = vand.u32 %v530, 8388607
    %v532 = vor.u32 %v531, 8388608
    %v533 = vsub.s32 0, %v532
    %v534 = vadd.s32 %v529, 1
    %vm535 = vcmp.gt.s32.totalorder %v534, 0
    %v536 = vsel %vm535, %v534, 0
    %v537 = vshrl.u32 %v536, 5
    %v538 = vand.u32 %v536, 31
    %v539 = vsub.s32 32, %v538
    %v540 = vshrl.u32 683565275, %v539
    %v541 = vshll.u32 683565275, %v538
    %v542 = vshrl.u32 2475754826, %v539
    %v543 = vor.u32 %v541, %v542
    %v544 = vshll.u32 2475754826, %v538
    %v545 = vshrl.u32 2131351028, %v539
    %v546 = vor.u32 %v544, %v545
    %v547 = vshll.u32 2131351028, %v538
    %v548 = vshrl.u32 2102212464, %v539
    %v549 = vor.u32 %v547, %v548
    %v550 = vshll.u32 2102212464, %v538
    %v551 = vshrl.u32 920167782, %v539
    %v552 = vor.u32 %v550, %v551
    %v553 = vshll.u32 920167782, %v538
    %v554 = vshrl.u32 1326507024, %v539
    %v555 = vor.u32 %v553, %v554
    %vm556 = vcmp.lt.s32.totalorder %v537, 1
    %vm557 = vcmp.lt.s32.totalorder %v537, 2
    %vm558 = vcmp.lt.s32.totalorder %v537, 3
    %vm559 = vcmp.lt.s32.totalorder %v537, 4
    %v560 = vsel %vm556, %v540, %v543
    %v561 = vsel %vm559, %v549, 2102212464
    %v562 = vsel %vm558, %v546, %v561
    %v563 = vsel %vm557, %v560, %v562
    %v564 = vsel %vm556, %v543, %v546
    %v565 = vsel %vm559, %v552, 920167782
    %v566 = vsel %vm558, %v549, %v565
    %v567 = vsel %vm557, %v564, %v566
    %v568 = vsel %vm556, %v546, %v549
    %v569 = vsel %vm559, %v555, 1326507024
    %v570 = vsel %vm558, %v552, %v569
    %v571 = vsel %vm557, %v568, %v570
    %v572 = vshll.u32 %v532, 8
    %v573 = vmul.u32.u64.compose %v572, %v571
    %v574 = vextract.low.u32 %v573
    %v575 = vextract.high.u32 %v573
    %v576 = vmul.u32.u64.compose %v572, %v567
    %v577 = vextract.low.u32 %v576
    %v578 = vextract.high.u32 %v576
    %v579 = vmul.u32 %v572, %v563
    %v580 = vadd.s32 %v575, %v577
    %vm581 = vc.u32 %v575, %v577
    %v582 = vadd.s32 %v578, 1
    %v583 = vsel %vm581, %v582, %v578
    %v584 = vadd.s32 %v579, %v583
    %v585 = vadd.s32 %v584, 536870912
    %v586 = vshrl.u32 %v585, 30
    %v587 = vshll.u32 %v586, 30
    %v588 = vsub.s32 %v584, %v587
    %vm589 = vcmp.lt.s32.totalorder %v588, 0
    %v590 = vsub.s32 0, %v588
    %v591 = vsel %vm589, %v590, %v588
    %v592 = vclz %v591
    %v593 = vsub.s32 %v592, 2
    %vm594 = vcmp.gt.s32.totalorder 0, %v593
    %v595 = vsel %vm594, 0, %v593
    %v596 = vsub.s32 32, %v595
    %v597 = vshll.u32 %v588, %v595
    %v598 = vshrl.u32 %v580, %v596
    %v599 = vor.u32 %v597, %v598
    %v600 = vsub.s32 4294967266, %v595
    %v601 = vadd.s32 %v600, 127
    %v602 = vshll.u32 %v601, 23
    %v603 = vor.u32 4788187, %v602
    %v604 = vand.u32 2147483647, %v603
    %v606 = vcvt.s32.f32 %v599
    %v607 = vmul.f32 %v606, %v604
    %v608 = vxor.u32 %v607, 2147483648
    %v609 = vsel %vm526, %v608, %v607
    %v610 = vsub.s32 4, %v586
    %v611 = vsel %vm526, %v610, %v586
    %v612 = vsel %vm525, %v199, %v609
    %v613 = vsel %vm525, 0, %v611
    %v614 = vcosq.f32.pop %v612
    %v615 = vsinq.f32.pop %v612
    %vm616 = vweird.f32 %v199
    %v617 = vadd.s32 %v613, 3
    %v618 = vand.u32 %v617, 3
    %vm619 = vcmp.lt.s32.totalorder %v618, 2
    %vm620 = vcmp.eq.s32.totalorder %v618, 0
    %v621 = vxor.u32 %v615, 2147483648
    %v622 = vsel %vm620, %v614, %v621
    %vm623 = vcmp.eq.s32.totalorder %v618, 2
    %v624 = vxor.u32 %v614, 2147483648
    %v625 = vsel %vm623, %v624, %v615
    %v626 = vsel %vm619, %v622, %v625
    %v627 = vsel %vm616, nan, %v626
    %v628 = vand.u32 2147483647, %v200
    %vm629 = vcmp.le.f32.partialorder %v628, 0.7853982
    %vm630 = vcmp.lt.s32.totalorder %v200, 0
    %v631 = vand.u32 %v200, 2139095040
    %v632 = vshrl.u32 %v631, 23
    %v633 = vsub.s32 %v632, 127
    %v634 = vand.u32 2147483647, %v200
    %v635 = vand.u32 %v634, 8388607
    %v636 = vor.u32 %v635, 8388608
    %v637 = vsub.s32 0, %v636
    %v638 = vadd.s32 %v633, 1
    %vm639 = vcmp.gt.s32.totalorder %v638, 0
    %v640 = vsel %vm639, %v638, 0
    %v641 = vshrl.u32 %v640, 5
    %v642 = vand.u32 %v640, 31
    %v643 = vsub.s32 32, %v642
    %v644 = vshrl.u32 683565275, %v643
    %v645 = vshll.u32 683565275, %v642
    %v646 = vshrl.u32 2475754826, %v643
    %v647 = vor.u32 %v645, %v646
    %v648 = vshll.u32 2475754826, %v642
    %v649 = vshrl.u32 2131351028, %v643
    %v650 = vor.u32 %v648, %v649
    %v651 = vshll.u32 2131351028, %v642
    %v652 = vshrl.u32 2102212464, %v643
    %v653 = vor.u32 %v651, %v652
    %v654 = vshll.u32 2102212464, %v642
    %v655 = vshrl.u32 920167782, %v643
    %v656 = vor.u32 %v654, %v655
    %v657 = vshll.u32 920167782, %v642
    %v658 = vshrl.u32 1326507024, %v643
    %v659 = vor.u32 %v657, %v658
    %vm660 = vcmp.lt.s32.totalorder %v641, 1
    %vm661 = vcmp.lt.s32.totalorder %v641, 2
    %vm662 = vcmp.lt.s32.totalorder %v641, 3
    %vm663 = vcmp.lt.s32.totalorder %v641, 4
    %v664 = vsel %vm660, %v644, %v647
    %v665 = vsel %vm663, %v653, 2102212464
    %v666 = vsel %vm662, %v650, %v665
    %v667 = vsel %vm661, %v664, %v666
    %v668 = vsel %vm660, %v647, %v650
    %v669 = vsel %vm663, %v656, 920167782
    %v670 = vsel %vm662, %v653, %v669
    %v671 = vsel %vm661, %v668, %v670
    %v672 = vsel %vm660, %v650, %v653
    %v673 = vsel %vm663, %v659, 1326507024
    %v674 = vsel %vm662, %v656, %v673
    %v675 = vsel %vm661, %v672, %v674
    %v676 = vshll.u32 %v636, 8
    %v677 = vmul.u32.u64.compose %v676, %v675
    %v678 = vextract.low.u32 %v677
    %v679 = vextract.high.u32 %v677
    %v680 = vmul.u32.u64.compose %v676, %v671
    %v681 = vextract.low.u32 %v680
    %v682 = vextract.high.u32 %v680
    %v683 = vmul.u32 %v676, %v667
    %v684 = vadd.s32 %v679, %v681
    %vm685 = vc.u32 %v679, %v681
    %v686 = vadd.s32 %v682, 1
    %v687 = vsel %vm685, %v686, %v682
    %v688 = vadd.s32 %v683, %v687
    %v689 = vadd.s32 %v688, 536870912
    %v690 = vshrl.u32 %v689, 30
    %v691 = vshll.u32 %v690, 30
    %v692 = vsub.s32 %v688, %v691
    %vm693 = vcmp.lt.s32.totalorder %v692, 0
    %v694 = vsub.s32 0, %v692
    %v695 = vsel %vm693, %v694, %v692
    %v696 = vclz %v695
    %v697 = vsub.s32 %v696, 2
    %vm698 = vcmp.gt.s32.totalorder 0, %v697
    %v699 = vsel %vm698, 0, %v697
    %v700 = vsub.s32 32, %v699
    %v701 = vshll.u32 %v692, %v699
    %v702 = vshrl.u32 %v684, %v700
    %v703 = vor.u32 %v701, %v702
    %v704 = vsub.s32 4294967266, %v699
    %v705 = vadd.s32 %v704, 127
    %v706 = vshll.u32 %v705, 23
    %v707 = vor.u32 4788187, %v706
    %v708 = vand.u32 2147483647, %v707
    %v710 = vcvt.s32.f32 %v703
    %v711 = vmul.f32 %v710, %v708
    %v712 = vxor.u32 %v711, 2147483648
    %v713 = vsel %vm630, %v712, %v711
    %v714 = vsub.s32 4, %v690
    %v715 = vsel %vm630, %v714, %v690
    %v716 = vsel %vm629, %v200, %v713
    %v717 = vsel %vm629, 0, %v715
    %v718 = vcosq.f32.pop %v716
    %v719 = vsinq.f32.pop %v716
    %vm720 = vweird.f32 %v200
    %v721 = vadd.s32 %v717, 3
    %v722 = vand.u32 %v721, 3
    %vm723 = vcmp.lt.s32.totalorder %v722, 2
    %vm724 = vcmp.eq.s32.totalorder %v722, 0
    %v725 = vxor.u32 %v719, 2147483648
    %v726 = vsel %vm724, %v718, %v725
    %vm727 = vcmp.eq.s32.totalorder %v722, 2
    %v728 = vxor.u32 %v718, 2147483648
    %v729 = vsel %vm727, %v728, %v719
    %v730 = vsel %vm723, %v726, %v729
    %v731 = vsel %vm720, nan, %v730
    %v732 = vand.u32 2147483647, %v201
    %vm733 = vcmp.le.f32.partialorder %v732, 0.7853982
    %vm734 = vcmp.lt.s32.totalorder %v201, 0
    %v735 = vand.u32 %v201, 2139095040
    %v736 = vshrl.u32 %v735, 23
    %v737 = vsub.s32 %v736, 127
    %v738 = vand.u32 2147483647, %v201
    %v739 = vand.u32 %v738, 8388607
    %v740 = vor.u32 %v739, 8388608
    %v741 = vsub.s32 0, %v740
    %v742 = vadd.s32 %v737, 1
    %vm743 = vcmp.gt.s32.totalorder %v742, 0
    %v744 = vsel %vm743, %v742, 0
    %v745 = vshrl.u32 %v744, 5
    %v746 = vand.u32 %v744, 31
    %v747 = vsub.s32 32, %v746
    %v748 = vshrl.u32 683565275, %v747
    %v749 = vshll.u32 683565275, %v746
    %v750 = vshrl.u32 2475754826, %v747
    %v751 = vor.u32 %v749, %v750
    %v752 = vshll.u32 2475754826, %v746
    %v753 = vshrl.u32 2131351028, %v747
    %v754 = vor.u32 %v752, %v753
    %v755 = vshll.u32 2131351028, %v746
    %v756 = vshrl.u32 2102212464, %v747
    %v757 = vor.u32 %v755, %v756
    %v758 = vshll.u32 2102212464, %v746
    %v759 = vshrl.u32 920167782, %v747
    %v760 = vor.u32 %v758, %v759
    %v761 = vshll.u32 920167782, %v746
    %v762 = vshrl.u32 1326507024, %v747
    %v763 = vor.u32 %v761, %v762
    %vm764 = vcmp.lt.s32.totalorder %v745, 1
    %vm765 = vcmp.lt.s32.totalorder %v745, 2
    %vm766 = vcmp.lt.s32.totalorder %v745, 3
    %vm767 = vcmp.lt.s32.totalorder %v745, 4
    %v768 = vsel %vm764, %v748, %v751
    %v769 = vsel %vm767, %v757, 2102212464
    %v770 = vsel %vm766, %v754, %v769
    %v771 = vsel %vm765, %v768, %v770
    %v772 = vsel %vm764, %v751, %v754
    %v773 = vsel %vm767, %v760, 920167782
    %v774 = vsel %vm766, %v757, %v773
    %v775 = vsel %vm765, %v772, %v774
    %v776 = vsel %vm764, %v754, %v757
    %v777 = vsel %vm767, %v763, 1326507024
    %v778 = vsel %vm766, %v760, %v777
    %v779 = vsel %vm765, %v776, %v778
    %v780 = vshll.u32 %v740, 8
    %v781 = vmul.u32.u64.compose %v780, %v779
    %v782 = vextract.low.u32 %v781
    %v783 = vextract.high.u32 %v781
    %v784 = vmul.u32.u64.compose %v780, %v775
    %v785 = vextract.low.u32 %v784
    %v786 = vextract.high.u32 %v784
    %v787 = vmul.u32 %v780, %v771
    %v788 = vadd.s32 %v783, %v785
    %vm789 = vc.u32 %v783, %v785
    %v790 = vadd.s32 %v786, 1
    %v791 = vsel %vm789, %v790, %v786
    %v792 = vadd.s32 %v787, %v791
    %v793 = vadd.s32 %v792, 536870912
    %v794 = vshrl.u32 %v793, 30
    %v795 = vshll.u32 %v794, 30
    %v796 = vsub.s32 %v792, %v795
    %vm797 = vcmp.lt.s32.totalorder %v796, 0
    %v798 = vsub.s32 0, %v796
    %v799 = vsel %vm797, %v798, %v796
    %v800 = vclz %v799
    %v801 = vsub.s32 %v800, 2
    %vm802 = vcmp.gt.s32.totalorder 0, %v801
    %v803 = vsel %vm802, 0, %v801
    %v804 = vsub.s32 32, %v803
    %v805 = vshll.u32 %v796, %v803
    %v806 = vshrl.u32 %v788, %v804
    %v807 = vor.u32 %v805, %v806
    %v808 = vsub.s32 4294967266, %v803
    %v809 = vadd.s32 %v808, 127
    %v810 = vshll.u32 %v809, 23
    %v811 = vor.u32 4788187, %v810
    %v812 = vand.u32 2147483647, %v811
    %v814 = vcvt.s32.f32 %v807
    %v815 = vmul.f32 %v814, %v812
    %v816 = vxor.u32 %v815, 2147483648
    %v817 = vsel %vm734, %v816, %v815
    %v818 = vsub.s32 4, %v794
    %v819 = vsel %vm734, %v818, %v794
    %v820 = vsel %vm733, %v201, %v817
    %v821 = vsel %vm733, 0, %v819
    %v822 = vcosq.f32.pop %v820
    %v823 = vsinq.f32.pop %v820
    %vm824 = vweird.f32 %v201
    %v825 = vadd.s32 %v821, 3
    %v826 = vand.u32 %v825, 3
    %vm827 = vcmp.lt.s32.totalorder %v826, 2
    %vm828 = vcmp.eq.s32.totalorder %v826, 0
    %v829 = vxor.u32 %v823, 2147483648
    %v830 = vsel %vm828, %v822, %v829
    %vm831 = vcmp.eq.s32.totalorder %v826, 2
    %v832 = vxor.u32 %v822, 2147483648
    %v833 = vsel %vm831, %v832, %v823
    %v834 = vsel %vm827, %v830, %v833
    %v835 = vsel %vm824, nan, %v834
    %v836 = vand.u32 2147483647, %v202
    %vm837 = vcmp.le.f32.partialorder %v836, 0.7853982
    %vm838 = vcmp.lt.s32.totalorder %v202, 0
    %v839 = vand.u32 %v202, 2139095040
    %v840 = vshrl.u32 %v839, 23
    %v841 = vsub.s32 %v840, 127
    %v842 = vand.u32 2147483647, %v202
    %v843 = vand.u32 %v842, 8388607
    %v844 = vor.u32 %v843, 8388608
    %v845 = vsub.s32 0, %v844
    %v846 = vadd.s32 %v841, 1
    %vm847 = vcmp.gt.s32.totalorder %v846, 0
    %v848 = vsel %vm847, %v846, 0
    %v849 = vshrl.u32 %v848, 5
    %v850 = vand.u32 %v848, 31
    %v851 = vsub.s32 32, %v850
    %v852 = vshrl.u32 683565275, %v851
    %v853 = vshll.u32 683565275, %v850
    %v854 = vshrl.u32 2475754826, %v851
    %v855 = vor.u32 %v853, %v854
    %v856 = vshll.u32 2475754826, %v850
    %v857 = vshrl.u32 2131351028, %v851
    %v858 = vor.u32 %v856, %v857
    %v859 = vshll.u32 2131351028, %v850
    %v860 = vshrl.u32 2102212464, %v851
    %v861 = vor.u32 %v859, %v860
    %v862 = vshll.u32 2102212464, %v850
    %v863 = vshrl.u32 920167782, %v851
    %v864 = vor.u32 %v862, %v863
    %v865 = vshll.u32 920167782, %v850
    %v866 = vshrl.u32 1326507024, %v851
    %v867 = vor.u32 %v865, %v866
    %vm868 = vcmp.lt.s32.totalorder %v849, 1
    %vm869 = vcmp.lt.s32.totalorder %v849, 2
    %vm870 = vcmp.lt.s32.totalorder %v849, 3
    %vm871 = vcmp.lt.s32.totalorder %v849, 4
    %v872 = vsel %vm868, %v852, %v855
    %v873 = vsel %vm871, %v861, 2102212464
    %v874 = vsel %vm870, %v858, %v873
    %v875 = vsel %vm869, %v872, %v874
    %v876 = vsel %vm868, %v855, %v858
    %v877 = vsel %vm871, %v864, 920167782
    %v878 = vsel %vm870, %v861, %v877
    %v879 = vsel %vm869, %v876, %v878
    %v880 = vsel %vm868, %v858, %v861
    %v881 = vsel %vm871, %v867, 1326507024
    %v882 = vsel %vm870, %v864, %v881
    %v883 = vsel %vm869, %v880, %v882
    %v884 = vshll.u32 %v844, 8
    %v885 = vmul.u32.u64.compose %v884, %v883
    %v886 = vextract.low.u32 %v885
    %v887 = vextract.high.u32 %v885
    %v888 = vmul.u32.u64.compose %v884, %v879
    %v889 = vextract.low.u32 %v888
    %v890 = vextract.high.u32 %v888
    %v891 = vmul.u32 %v884, %v875
    %v892 = vadd.s32 %v887, %v889
    %vm893 = vc.u32 %v887, %v889
    %v894 = vadd.s32 %v890, 1
    %v895 = vsel %vm893, %v894, %v890
    %v896 = vadd.s32 %v891, %v895
    %v897 = vadd.s32 %v896, 536870912
    %v898 = vshrl.u32 %v897, 30
    %v899 = vshll.u32 %v898, 30
    %v900 = vsub.s32 %v896, %v899
    %vm901 = vcmp.lt.s32.totalorder %v900, 0
    %v902 = vsub.s32 0, %v900
    %v903 = vsel %vm901, %v902, %v900
    %v904 = vclz %v903
    %v905 = vsub.s32 %v904, 2
    %vm906 = vcmp.gt.s32.totalorder 0, %v905
    %v907 = vsel %vm906, 0, %v905
    %v908 = vsub.s32 32, %v907
    %v909 = vshll.u32 %v900, %v907
    %v910 = vshrl.u32 %v892, %v908
    %v911 = vor.u32 %v909, %v910
    %v912 = vsub.s32 4294967266, %v907
    %v913 = vadd.s32 %v912, 127
    %v914 = vshll.u32 %v913, 23
    %v915 = vor.u32 4788187, %v914
    %v916 = vand.u32 2147483647, %v915
    %v918 = vcvt.s32.f32 %v911
    %v919 = vmul.f32 %v918, %v916
    %v920 = vxor.u32 %v919, 2147483648
    %v921 = vsel %vm838, %v920, %v919
    %v922 = vsub.s32 4, %v898
    %v923 = vsel %vm838, %v922, %v898
    %v924 = vsel %vm837, %v202, %v921
    %v925 = vsel %vm837, 0, %v923
    %v926 = vcosq.f32.pop %v924
    %v927 = vsinq.f32.pop %v924
    %vm928 = vweird.f32 %v202
    %v929 = vadd.s32 %v925, 3
    %v930 = vand.u32 %v929, 3
    %vm931 = vcmp.lt.s32.totalorder %v930, 2
    %vm932 = vcmp.eq.s32.totalorder %v930, 0
    %v933 = vxor.u32 %v927, 2147483648
    %v934 = vsel %vm932, %v926, %v933
    %vm935 = vcmp.eq.s32.totalorder %v930, 2
    %v936 = vxor.u32 %v926, 2147483648
    %v937 = vsel %vm935, %v936, %v927
    %v938 = vsel %vm931, %v934, %v937
    %v939 = vsel %vm928, nan, %v938
    %v940 = vand.u32 2147483647, %v203
    %vm941 = vcmp.le.f32.partialorder %v940, 0.7853982
    %vm942 = vcmp.lt.s32.totalorder %v203, 0
    %v943 = vand.u32 %v203, 2139095040
    %v944 = vshrl.u32 %v943, 23
    %v945 = vsub.s32 %v944, 127
    %v946 = vand.u32 2147483647, %v203
    %v947 = vand.u32 %v946, 8388607
    %v948 = vor.u32 %v947, 8388608
    %v949 = vsub.s32 0, %v948
    %v950 = vadd.s32 %v945, 1
    %vm951 = vcmp.gt.s32.totalorder %v950, 0
    %v952 = vsel %vm951, %v950, 0
    %v953 = vshrl.u32 %v952, 5
    %v954 = vand.u32 %v952, 31
    %v955 = vsub.s32 32, %v954
    %v956 = vshrl.u32 683565275, %v955
    %v957 = vshll.u32 683565275, %v954
    %v958 = vshrl.u32 2475754826, %v955
    %v959 = vor.u32 %v957, %v958
    %v960 = vshll.u32 2475754826, %v954
    %v961 = vshrl.u32 2131351028, %v955
    %v962 = vor.u32 %v960, %v961
    %v963 = vshll.u32 2131351028, %v954
    %v964 = vshrl.u32 2102212464, %v955
    %v965 = vor.u32 %v963, %v964
    %v966 = vshll.u32 2102212464, %v954
    %v967 = vshrl.u32 920167782, %v955
    %v968 = vor.u32 %v966, %v967
    %v969 = vshll.u32 920167782, %v954
    %v970 = vshrl.u32 1326507024, %v955
    %v971 = vor.u32 %v969, %v970
    %vm972 = vcmp.lt.s32.totalorder %v953, 1
    %vm973 = vcmp.lt.s32.totalorder %v953, 2
    %vm974 = vcmp.lt.s32.totalorder %v953, 3
    %vm975 = vcmp.lt.s32.totalorder %v953, 4
    %v976 = vsel %vm972, %v956, %v959
    %v977 = vsel %vm975, %v965, 2102212464
    %v978 = vsel %vm974, %v962, %v977
    %v979 = vsel %vm973, %v976, %v978
    %v980 = vsel %vm972, %v959, %v962
    %v981 = vsel %vm975, %v968, 920167782
    %v982 = vsel %vm974, %v965, %v981
    %v983 = vsel %vm973, %v980, %v982
    %v984 = vsel %vm972, %v962, %v965
    %v985 = vsel %vm975, %v971, 1326507024
    %v986 = vsel %vm974, %v968, %v985
    %v987 = vsel %vm973, %v984, %v986
    %v988 = vshll.u32 %v948, 8
    %v989 = vmul.u32.u64.compose %v988, %v987
    %v990 = vextract.low.u32 %v989
    %v991 = vextract.high.u32 %v989
    %v992 = vmul.u32.u64.compose %v988, %v983
    %v993 = vextract.low.u32 %v992
    %v994 = vextract.high.u32 %v992
    %v995 = vmul.u32 %v988, %v979
    %v996 = vadd.s32 %v991, %v993
    %vm997 = vc.u32 %v991, %v993
    %v998 = vadd.s32 %v994, 1
    %v999 = vsel %vm997, %v998, %v994
    %v1000 = vadd.s32 %v995, %v999
    %v1001 = vadd.s32 %v1000, 536870912
    %v1002 = vshrl.u32 %v1001, 30
    %v1003 = vshll.u32 %v1002, 30
    %v1004 = vsub.s32 %v1000, %v1003
    %vm1005 = vcmp.lt.s32.totalorder %v1004, 0
    %v1006 = vsub.s32 0, %v1004
    %v1007 = vsel %vm1005, %v1006, %v1004
    %v1008 = vclz %v1007
    %v1009 = vsub.s32 %v1008, 2
    %vm1010 = vcmp.gt.s32.totalorder 0, %v1009
    %v1011 = vsel %vm1010, 0, %v1009
    %v1012 = vsub.s32 32, %v1011
    %v1013 = vshll.u32 %v1004, %v1011
    %v1014 = vshrl.u32 %v996, %v1012
    %v1015 = vor.u32 %v1013, %v1014
    %v1016 = vsub.s32 4294967266, %v1011
    %v1017 = vadd.s32 %v1016, 127
    %v1018 = vshll.u32 %v1017, 23
    %v1019 = vor.u32 4788187, %v1018
    %v1020 = vand.u32 2147483647, %v1019
    %v1022 = vcvt.s32.f32 %v1015
    %v1023 = vmul.f32 %v1022, %v1020
    %v1024 = vxor.u32 %v1023, 2147483648
    %v1025 = vsel %vm942, %v1024, %v1023
    %v1026 = vsub.s32 4, %v1002
    %v1027 = vsel %vm942, %v1026, %v1002
    %v1028 = vsel %vm941, %v203, %v1025
    %v1029 = vsel %vm941, 0, %v1027
    %v1030 = vcosq.f32.pop %v1028
    %v1031 = vsinq.f32.pop %v1028
    %vm1032 = vweird.f32 %v203
    %v1033 = vadd.s32 %v1029, 3
    %v1034 = vand.u32 %v1033, 3
    %vm1035 = vcmp.lt.s32.totalorder %v1034, 2
    %vm1036 = vcmp.eq.s32.totalorder %v1034, 0
    %v1037 = vxor.u32 %v1031, 2147483648
    %v1038 = vsel %vm1036, %v1030, %v1037
    %vm1039 = vcmp.eq.s32.totalorder %v1034, 2
    %v1040 = vxor.u32 %v1030, 2147483648
    %v1041 = vsel %vm1039, %v1040, %v1031
    %v1042 = vsel %vm1035, %v1038, %v1041
    %v1043 = vsel %vm1032, nan, %v1042
    %v1044 = vand.u32 2147483647, %v204
    %vm1045 = vcmp.le.f32.partialorder %v1044, 0.7853982
    %vm1046 = vcmp.lt.s32.totalorder %v204, 0
    %v1047 = vand.u32 %v204, 2139095040
    %v1048 = vshrl.u32 %v1047, 23
    %v1049 = vsub.s32 %v1048, 127
    %v1050 = vand.u32 2147483647, %v204
    %v1051 = vand.u32 %v1050, 8388607
    %v1052 = vor.u32 %v1051, 8388608
    %v1053 = vsub.s32 0, %v1052
    %v1054 = vadd.s32 %v1049, 1
    %vm1055 = vcmp.gt.s32.totalorder %v1054, 0
    %v1056 = vsel %vm1055, %v1054, 0
    %v1057 = vshrl.u32 %v1056, 5
    %v1058 = vand.u32 %v1056, 31
    %v1059 = vsub.s32 32, %v1058
    %v1060 = vshrl.u32 683565275, %v1059
    %v1061 = vshll.u32 683565275, %v1058
    %v1062 = vshrl.u32 2475754826, %v1059
    %v1063 = vor.u32 %v1061, %v1062
    %v1064 = vshll.u32 2475754826, %v1058
    %v1065 = vshrl.u32 2131351028, %v1059
    %v1066 = vor.u32 %v1064, %v1065
    %v1067 = vshll.u32 2131351028, %v1058
    %v1068 = vshrl.u32 2102212464, %v1059
    %v1069 = vor.u32 %v1067, %v1068
    %v1070 = vshll.u32 2102212464, %v1058
    %v1071 = vshrl.u32 920167782, %v1059
    %v1072 = vor.u32 %v1070, %v1071
    %v1073 = vshll.u32 920167782, %v1058
    %v1074 = vshrl.u32 1326507024, %v1059
    %v1075 = vor.u32 %v1073, %v1074
    %vm1076 = vcmp.lt.s32.totalorder %v1057, 1
    %vm1077 = vcmp.lt.s32.totalorder %v1057, 2
    %vm1078 = vcmp.lt.s32.totalorder %v1057, 3
    %vm1079 = vcmp.lt.s32.totalorder %v1057, 4
    %v1080 = vsel %vm1076, %v1060, %v1063
    %v1081 = vsel %vm1079, %v1069, 2102212464
    %v1082 = vsel %vm1078, %v1066, %v1081
    %v1083 = vsel %vm1077, %v1080, %v1082
    %v1084 = vsel %vm1076, %v1063, %v1066
    %v1085 = vsel %vm1079, %v1072, 920167782
    %v1086 = vsel %vm1078, %v1069, %v1085
    %v1087 = vsel %vm1077, %v1084, %v1086
    %v1088 = vsel %vm1076, %v1066, %v1069
    %v1089 = vsel %vm1079, %v1075, 1326507024
    %v1090 = vsel %vm1078, %v1072, %v1089
    %v1091 = vsel %vm1077, %v1088, %v1090
    %v1092 = vshll.u32 %v1052, 8
    %v1093 = vmul.u32.u64.compose %v1092, %v1091
    %v1094 = vextract.low.u32 %v1093
    %v1095 = vextract.high.u32 %v1093
    %v1096 = vmul.u32.u64.compose %v1092, %v1087
    %v1097 = vextract.low.u32 %v1096
    %v1098 = vextract.high.u32 %v1096
    %v1099 = vmul.u32 %v1092, %v1083
    %v1100 = vadd.s32 %v1095, %v1097
    %vm1101 = vc.u32 %v1095, %v1097
    %v1102 = vadd.s32 %v1098, 1
    %v1103 = vsel %vm1101, %v1102, %v1098
    %v1104 = vadd.s32 %v1099, %v1103
    %v1105 = vadd.s32 %v1104, 536870912
    %v1106 = vshrl.u32 %v1105, 30
    %v1107 = vshll.u32 %v1106, 30
    %v1108 = vsub.s32 %v1104, %v1107
    %vm1109 = vcmp.lt.s32.totalorder %v1108, 0
    %v1110 = vsub.s32 0, %v1108
    %v1111 = vsel %vm1109, %v1110, %v1108
    %v1112 = vclz %v1111
    %v1113 = vsub.s32 %v1112, 2
    %vm1114 = vcmp.gt.s32.totalorder 0, %v1113
    %v1115 = vsel %vm1114, 0, %v1113
    %v1116 = vsub.s32 32, %v1115
    %v1117 = vshll.u32 %v1108, %v1115
    %v1118 = vshrl.u32 %v1100, %v1116
    %v1119 = vor.u32 %v1117, %v1118
    %v1120 = vsub.s32 4294967266, %v1115
    %v1121 = vadd.s32 %v1120, 127
    %v1122 = vshll.u32 %v1121, 23
    %v1123 = vor.u32 4788187, %v1122
    %v1124 = vand.u32 2147483647, %v1123
    %v1126 = vcvt.s32.f32 %v1119
    %v1127 = vmul.f32 %v1126, %v1124
    %v1128 = vxor.u32 %v1127, 2147483648
    %v1129 = vsel %vm1046, %v1128, %v1127
    %v1130 = vsub.s32 4, %v1106
    %v1131 = vsel %vm1046, %v1130, %v1106
    %v1132 = vsel %vm1045, %v204, %v1129
    %v1133 = vsel %vm1045, 0, %v1131
    %v1134 = vcosq.f32.pop %v1132
    %v1135 = vsinq.f32.pop %v1132
    %vm1136 = vweird.f32 %v204
    %v1137 = vadd.s32 %v1133, 3
    %v1138 = vand.u32 %v1137, 3
    %vm1139 = vcmp.lt.s32.totalorder %v1138, 2
    %vm1140 = vcmp.eq.s32.totalorder %v1138, 0
    %v1141 = vxor.u32 %v1135, 2147483648
    %v1142 = vsel %vm1140, %v1134, %v1141
    %vm1143 = vcmp.eq.s32.totalorder %v1138, 2
    %v1144 = vxor.u32 %v1134, 2147483648
    %v1145 = vsel %vm1143, %v1144, %v1135
    %v1146 = vsel %vm1139, %v1142, %v1145
    %v1147 = vsel %vm1136, nan, %v1146
    %v1148 = vand.u32 2147483647, %v205
    %vm1149 = vcmp.le.f32.partialorder %v1148, 0.7853982
    %vm1150 = vcmp.lt.s32.totalorder %v205, 0
    %v1151 = vand.u32 %v205, 2139095040
    %v1152 = vshrl.u32 %v1151, 23
    %v1153 = vsub.s32 %v1152, 127
    %v1154 = vand.u32 2147483647, %v205
    %v1155 = vand.u32 %v1154, 8388607
    %v1156 = vor.u32 %v1155, 8388608
    %v1157 = vsub.s32 0, %v1156
    %v1158 = vadd.s32 %v1153, 1
    %vm1159 = vcmp.gt.s32.totalorder %v1158, 0
    %v1160 = vsel %vm1159, %v1158, 0
    %v1161 = vshrl.u32 %v1160, 5
    %v1162 = vand.u32 %v1160, 31
    %v1163 = vsub.s32 32, %v1162
    %v1164 = vshrl.u32 683565275, %v1163
    %v1165 = vshll.u32 683565275, %v1162
    %v1166 = vshrl.u32 2475754826, %v1163
    %v1167 = vor.u32 %v1165, %v1166
    %v1168 = vshll.u32 2475754826, %v1162
    %v1169 = vshrl.u32 2131351028, %v1163
    %v1170 = vor.u32 %v1168, %v1169
    %v1171 = vshll.u32 2131351028, %v1162
    %v1172 = vshrl.u32 2102212464, %v1163
    %v1173 = vor.u32 %v1171, %v1172
    %v1174 = vshll.u32 2102212464, %v1162
    %v1175 = vshrl.u32 920167782, %v1163
    %v1176 = vor.u32 %v1174, %v1175
    %v1177 = vshll.u32 920167782, %v1162
    %v1178 = vshrl.u32 1326507024, %v1163
    %v1179 = vor.u32 %v1177, %v1178
    %vm1180 = vcmp.lt.s32.totalorder %v1161, 1
    %vm1181 = vcmp.lt.s32.totalorder %v1161, 2
    %vm1182 = vcmp.lt.s32.totalorder %v1161, 3
    %vm1183 = vcmp.lt.s32.totalorder %v1161, 4
    %v1184 = vsel %vm1180, %v1164, %v1167
    %v1185 = vsel %vm1183, %v1173, 2102212464
    %v1186 = vsel %vm1182, %v1170, %v1185
    %v1187 = vsel %vm1181, %v1184, %v1186
    %v1188 = vsel %vm1180, %v1167, %v1170
    %v1189 = vsel %vm1183, %v1176, 920167782
    %v1190 = vsel %vm1182, %v1173, %v1189
    %v1191 = vsel %vm1181, %v1188, %v1190
    %v1192 = vsel %vm1180, %v1170, %v1173
    %v1193 = vsel %vm1183, %v1179, 1326507024
    %v1194 = vsel %vm1182, %v1176, %v1193
    %v1195 = vsel %vm1181, %v1192, %v1194
    %v1196 = vshll.u32 %v1156, 8
    %v1197 = vmul.u32.u64.compose %v1196, %v1195
    %v1198 = vextract.low.u32 %v1197
    %v1199 = vextract.high.u32 %v1197
    %v1200 = vmul.u32.u64.compose %v1196, %v1191
    %v1201 = vextract.low.u32 %v1200
    %v1202 = vextract.high.u32 %v1200
    %v1203 = vmul.u32 %v1196, %v1187
    %v1204 = vadd.s32 %v1199, %v1201
    %vm1205 = vc.u32 %v1199, %v1201
    %v1206 = vadd.s32 %v1202, 1
    %v1207 = vsel %vm1205, %v1206, %v1202
    %v1208 = vadd.s32 %v1203, %v1207
    %v1209 = vadd.s32 %v1208, 536870912
    %v1210 = vshrl.u32 %v1209, 30
    %v1211 = vshll.u32 %v1210, 30
    %v1212 = vsub.s32 %v1208, %v1211
    %vm1213 = vcmp.lt.s32.totalorder %v1212, 0
    %v1214 = vsub.s32 0, %v1212
    %v1215 = vsel %vm1213, %v1214, %v1212
    %v1216 = vclz %v1215
    %v1217 = vsub.s32 %v1216, 2
    %vm1218 = vcmp.gt.s32.totalorder 0, %v1217
    %v1219 = vsel %vm1218, 0, %v1217
    %v1220 = vsub.s32 32, %v1219
    %v1221 = vshll.u32 %v1212, %v1219
    %v1222 = vshrl.u32 %v1204, %v1220
    %v1223 = vor.u32 %v1221, %v1222
    %v1224 = vsub.s32 4294967266, %v1219
    %v1225 = vadd.s32 %v1224, 127
    %v1226 = vshll.u32 %v1225, 23
    %v1227 = vor.u32 4788187, %v1226
    %v1228 = vand.u32 2147483647, %v1227
    %v1230 = vcvt.s32.f32 %v1223
    %v1231 = vmul.f32 %v1230, %v1228
    %v1232 = vxor.u32 %v1231, 2147483648
    %v1233 = vsel %vm1150, %v1232, %v1231
    %v1234 = vsub.s32 4, %v1210
    %v1235 = vsel %vm1150, %v1234, %v1210
    %v1236 = vsel %vm1149, %v205, %v1233
    %v1237 = vsel %vm1149, 0, %v1235
    %v1238 = vcosq.f32.pop %v1236
    %v1239 = vsinq.f32.pop %v1236
    %vm1240 = vweird.f32 %v205
    %v1241 = vadd.s32 %v1237, 3
    %v1242 = vand.u32 %v1241, 3
    %vm1243 = vcmp.lt.s32.totalorder %v1242, 2
    %vm1244 = vcmp.eq.s32.totalorder %v1242, 0
    %v1245 = vxor.u32 %v1239, 2147483648
    %v1246 = vsel %vm1244, %v1238, %v1245
    %vm1247 = vcmp.eq.s32.totalorder %v1242, 2
    %v1248 = vxor.u32 %v1238, 2147483648
    %v1249 = vsel %vm1247, %v1248, %v1239
    %v1250 = vsel %vm1243, %v1246, %v1249
    %v1251 = vsel %vm1240, nan, %v1250
    %v1252 = vand.u32 2147483647, %v206
    %vm1253 = vcmp.le.f32.partialorder %v1252, 0.7853982
    %vm1254 = vcmp.lt.s32.totalorder %v206, 0
    %v1255 = vand.u32 %v206, 2139095040
    %v1256 = vshrl.u32 %v1255, 23
    %v1257 = vsub.s32 %v1256, 127
    %v1258 = vand.u32 2147483647, %v206
    %v1259 = vand.u32 %v1258, 8388607
    %v1260 = vor.u32 %v1259, 8388608
    %v1261 = vsub.s32 0, %v1260
    %v1262 = vadd.s32 %v1257, 1
    %vm1263 = vcmp.gt.s32.totalorder %v1262, 0
    %v1264 = vsel %vm1263, %v1262, 0
    %v1265 = vshrl.u32 %v1264, 5
    %v1266 = vand.u32 %v1264, 31
    %v1267 = vsub.s32 32, %v1266
    %v1268 = vshrl.u32 683565275, %v1267
    %v1269 = vshll.u32 683565275, %v1266
    %v1270 = vshrl.u32 2475754826, %v1267
    %v1271 = vor.u32 %v1269, %v1270
    %v1272 = vshll.u32 2475754826, %v1266
    %v1273 = vshrl.u32 2131351028, %v1267
    %v1274 = vor.u32 %v1272, %v1273
    %v1275 = vshll.u32 2131351028, %v1266
    %v1276 = vshrl.u32 2102212464, %v1267
    %v1277 = vor.u32 %v1275, %v1276
    %v1278 = vshll.u32 2102212464, %v1266
    %v1279 = vshrl.u32 920167782, %v1267
    %v1280 = vor.u32 %v1278, %v1279
    %v1281 = vshll.u32 920167782, %v1266
    %v1282 = vshrl.u32 1326507024, %v1267
    %v1283 = vor.u32 %v1281, %v1282
    %vm1284 = vcmp.lt.s32.totalorder %v1265, 1
    %vm1285 = vcmp.lt.s32.totalorder %v1265, 2
    %vm1286 = vcmp.lt.s32.totalorder %v1265, 3
    %vm1287 = vcmp.lt.s32.totalorder %v1265, 4
    %v1288 = vsel %vm1284, %v1268, %v1271
    %v1289 = vsel %vm1287, %v1277, 2102212464
    %v1290 = vsel %vm1286, %v1274, %v1289
    %v1291 = vsel %vm1285, %v1288, %v1290
    %v1292 = vsel %vm1284, %v1271, %v1274
    %v1293 = vsel %vm1287, %v1280, 920167782
    %v1294 = vsel %vm1286, %v1277, %v1293
    %v1295 = vsel %vm1285, %v1292, %v1294
    %v1296 = vsel %vm1284, %v1274, %v1277
    %v1297 = vsel %vm1287, %v1283, 1326507024
    %v1298 = vsel %vm1286, %v1280, %v1297
    %v1299 = vsel %vm1285, %v1296, %v1298
    %v1300 = vshll.u32 %v1260, 8
    %v1301 = vmul.u32.u64.compose %v1300, %v1299
    %v1302 = vextract.low.u32 %v1301
    %v1303 = vextract.high.u32 %v1301
    %v1304 = vmul.u32.u64.compose %v1300, %v1295
    %v1305 = vextract.low.u32 %v1304
    %v1306 = vextract.high.u32 %v1304
    %v1307 = vmul.u32 %v1300, %v1291
    %v1308 = vadd.s32 %v1303, %v1305
    %vm1309 = vc.u32 %v1303, %v1305
    %v1310 = vadd.s32 %v1306, 1
    %v1311 = vsel %vm1309, %v1310, %v1306
    %v1312 = vadd.s32 %v1307, %v1311
    %v1313 = vadd.s32 %v1312, 536870912
    %v1314 = vshrl.u32 %v1313, 30
    %v1315 = vshll.u32 %v1314, 30
    %v1316 = vsub.s32 %v1312, %v1315
    %vm1317 = vcmp.lt.s32.totalorder %v1316, 0
    %v1318 = vsub.s32 0, %v1316
    %v1319 = vsel %vm1317, %v1318, %v1316
    %v1320 = vclz %v1319
    %v1321 = vsub.s32 %v1320, 2
    %vm1322 = vcmp.gt.s32.totalorder 0, %v1321
    %v1323 = vsel %vm1322, 0, %v1321
    %v1324 = vsub.s32 32, %v1323
    %v1325 = vshll.u32 %v1316, %v1323
    %v1326 = vshrl.u32 %v1308, %v1324
    %v1327 = vor.u32 %v1325, %v1326
    %v1328 = vsub.s32 4294967266, %v1323
    %v1329 = vadd.s32 %v1328, 127
    %v1330 = vshll.u32 %v1329, 23
    %v1331 = vor.u32 4788187, %v1330
    %v1332 = vand.u32 2147483647, %v1331
    %v1334 = vcvt.s32.f32 %v1327
    %v1335 = vmul.f32 %v1334, %v1332
    %v1336 = vxor.u32 %v1335, 2147483648
    %v1337 = vsel %vm1254, %v1336, %v1335
    %v1338 = vsub.s32 4, %v1314
    %v1339 = vsel %vm1254, %v1338, %v1314
    %v1340 = vsel %vm1253, %v206, %v1337
    %v1341 = vsel %vm1253, 0, %v1339
    %v1342 = vcosq.f32.pop %v1340
    %v1343 = vsinq.f32.pop %v1340
    %vm1344 = vweird.f32 %v206
    %v1345 = vadd.s32 %v1341, 3
    %v1346 = vand.u32 %v1345, 3
    %vm1347 = vcmp.lt.s32.totalorder %v1346, 2
    %vm1348 = vcmp.eq.s32.totalorder %v1346, 0
    %v1349 = vxor.u32 %v1343, 2147483648
    %v1350 = vsel %vm1348, %v1342, %v1349
    %vm1351 = vcmp.eq.s32.totalorder %v1346, 2
    %v1352 = vxor.u32 %v1342, 2147483648
    %v1353 = vsel %vm1351, %v1352, %v1343
    %v1354 = vsel %vm1347, %v1350, %v1353
    %v1355 = vsel %vm1344, nan, %v1354
    %v1356 = vand.u32 2147483647, %v207
    %vm1357 = vcmp.le.f32.partialorder %v1356, 0.7853982
    %vm1358 = vcmp.lt.s32.totalorder %v207, 0
    %v1359 = vand.u32 %v207, 2139095040
    %v1360 = vshrl.u32 %v1359, 23
    %v1361 = vsub.s32 %v1360, 127
    %v1362 = vand.u32 2147483647, %v207
    %v1363 = vand.u32 %v1362, 8388607
    %v1364 = vor.u32 %v1363, 8388608
    %v1365 = vsub.s32 0, %v1364
    %v1366 = vadd.s32 %v1361, 1
    %vm1367 = vcmp.gt.s32.totalorder %v1366, 0
    %v1368 = vsel %vm1367, %v1366, 0
    %v1369 = vshrl.u32 %v1368, 5
    %v1370 = vand.u32 %v1368, 31
    %v1371 = vsub.s32 32, %v1370
    %v1372 = vshrl.u32 683565275, %v1371
    %v1373 = vshll.u32 683565275, %v1370
    %v1374 = vshrl.u32 2475754826, %v1371
    %v1375 = vor.u32 %v1373, %v1374
    %v1376 = vshll.u32 2475754826, %v1370
    %v1377 = vshrl.u32 2131351028, %v1371
    %v1378 = vor.u32 %v1376, %v1377
    %v1379 = vshll.u32 2131351028, %v1370
    %v1380 = vshrl.u32 2102212464, %v1371
    %v1381 = vor.u32 %v1379, %v1380
    %v1382 = vshll.u32 2102212464, %v1370
    %v1383 = vshrl.u32 920167782, %v1371
    %v1384 = vor.u32 %v1382, %v1383
    %v1385 = vshll.u32 920167782, %v1370
    %v1386 = vshrl.u32 1326507024, %v1371
    %v1387 = vor.u32 %v1385, %v1386
    %vm1388 = vcmp.lt.s32.totalorder %v1369, 1
    %vm1389 = vcmp.lt.s32.totalorder %v1369, 2
    %vm1390 = vcmp.lt.s32.totalorder %v1369, 3
    %vm1391 = vcmp.lt.s32.totalorder %v1369, 4
    %v1392 = vsel %vm1388, %v1372, %v1375
    %v1393 = vsel %vm1391, %v1381, 2102212464
    %v1394 = vsel %vm1390, %v1378, %v1393
    %v1395 = vsel %vm1389, %v1392, %v1394
    %v1396 = vsel %vm1388, %v1375, %v1378
    %v1397 = vsel %vm1391, %v1384, 920167782
    %v1398 = vsel %vm1390, %v1381, %v1397
    %v1399 = vsel %vm1389, %v1396, %v1398
    %v1400 = vsel %vm1388, %v1378, %v1381
    %v1401 = vsel %vm1391, %v1387, 1326507024
    %v1402 = vsel %vm1390, %v1384, %v1401
    %v1403 = vsel %vm1389, %v1400, %v1402
    %v1404 = vshll.u32 %v1364, 8
    %v1405 = vmul.u32.u64.compose %v1404, %v1403
    %v1406 = vextract.low.u32 %v1405
    %v1407 = vextract.high.u32 %v1405
    %v1408 = vmul.u32.u64.compose %v1404, %v1399
    %v1409 = vextract.low.u32 %v1408
    %v1410 = vextract.high.u32 %v1408
    %v1411 = vmul.u32 %v1404, %v1395
    %v1412 = vadd.s32 %v1407, %v1409
    %vm1413 = vc.u32 %v1407, %v1409
    %v1414 = vadd.s32 %v1410, 1
    %v1415 = vsel %vm1413, %v1414, %v1410
    %v1416 = vadd.s32 %v1411, %v1415
    %v1417 = vadd.s32 %v1416, 536870912
    %v1418 = vshrl.u32 %v1417, 30
    %v1419 = vshll.u32 %v1418, 30
    %v1420 = vsub.s32 %v1416, %v1419
    %vm1421 = vcmp.lt.s32.totalorder %v1420, 0
    %v1422 = vsub.s32 0, %v1420
    %v1423 = vsel %vm1421, %v1422, %v1420
    %v1424 = vclz %v1423
    %v1425 = vsub.s32 %v1424, 2
    %vm1426 = vcmp.gt.s32.totalorder 0, %v1425
    %v1427 = vsel %vm1426, 0, %v1425
    %v1428 = vsub.s32 32, %v1427
    %v1429 = vshll.u32 %v1420, %v1427
    %v1430 = vshrl.u32 %v1412, %v1428
    %v1431 = vor.u32 %v1429, %v1430
    %v1432 = vsub.s32 4294967266, %v1427
    %v1433 = vadd.s32 %v1432, 127
    %v1434 = vshll.u32 %v1433, 23
    %v1435 = vor.u32 4788187, %v1434
    %v1436 = vand.u32 2147483647, %v1435
    %v1438 = vcvt.s32.f32 %v1431
    %v1439 = vmul.f32 %v1438, %v1436
    %v1440 = vxor.u32 %v1439, 2147483648
    %v1441 = vsel %vm1358, %v1440, %v1439
    %v1442 = vsub.s32 4, %v1418
    %v1443 = vsel %vm1358, %v1442, %v1418
    %v1444 = vsel %vm1357, %v207, %v1441
    %v1445 = vsel %vm1357, 0, %v1443
    %v1446 = vcosq.f32.pop %v1444
    %v1447 = vsinq.f32.pop %v1444
    %vm1448 = vweird.f32 %v207
    %v1449 = vadd.s32 %v1445, 3
    %v1450 = vand.u32 %v1449, 3
    %vm1451 = vcmp.lt.s32.totalorder %v1450, 2
    %vm1452 = vcmp.eq.s32.totalorder %v1450, 0
    %v1453 = vxor.u32 %v1447, 2147483648
    %v1454 = vsel %vm1452, %v1446, %v1453
    %vm1455 = vcmp.eq.s32.totalorder %v1450, 2
    %v1456 = vxor.u32 %v1446, 2147483648
    %v1457 = vsel %vm1455, %v1456, %v1447
    %v1458 = vsel %vm1451, %v1454, %v1457
    %v1459 = vsel %vm1448, nan, %v1458
    %v1460 = vand.u32 2147483647, %v208
    %vm1461 = vcmp.le.f32.partialorder %v1460, 0.7853982
    %vm1462 = vcmp.lt.s32.totalorder %v208, 0
    %v1463 = vand.u32 %v208, 2139095040
    %v1464 = vshrl.u32 %v1463, 23
    %v1465 = vsub.s32 %v1464, 127
    %v1466 = vand.u32 2147483647, %v208
    %v1467 = vand.u32 %v1466, 8388607
    %v1468 = vor.u32 %v1467, 8388608
    %v1469 = vsub.s32 0, %v1468
    %v1470 = vadd.s32 %v1465, 1
    %vm1471 = vcmp.gt.s32.totalorder %v1470, 0
    %v1472 = vsel %vm1471, %v1470, 0
    %v1473 = vshrl.u32 %v1472, 5
    %v1474 = vand.u32 %v1472, 31
    %v1475 = vsub.s32 32, %v1474
    %v1476 = vshrl.u32 683565275, %v1475
    %v1477 = vshll.u32 683565275, %v1474
    %v1478 = vshrl.u32 2475754826, %v1475
    %v1479 = vor.u32 %v1477, %v1478
    %v1480 = vshll.u32 2475754826, %v1474
    %v1481 = vshrl.u32 2131351028, %v1475
    %v1482 = vor.u32 %v1480, %v1481
    %v1483 = vshll.u32 2131351028, %v1474
    %v1484 = vshrl.u32 2102212464, %v1475
    %v1485 = vor.u32 %v1483, %v1484
    %v1486 = vshll.u32 2102212464, %v1474
    %v1487 = vshrl.u32 920167782, %v1475
    %v1488 = vor.u32 %v1486, %v1487
    %v1489 = vshll.u32 920167782, %v1474
    %v1490 = vshrl.u32 1326507024, %v1475
    %v1491 = vor.u32 %v1489, %v1490
    %vm1492 = vcmp.lt.s32.totalorder %v1473, 1
    %vm1493 = vcmp.lt.s32.totalorder %v1473, 2
    %vm1494 = vcmp.lt.s32.totalorder %v1473, 3
    %vm1495 = vcmp.lt.s32.totalorder %v1473, 4
    %v1496 = vsel %vm1492, %v1476, %v1479
    %v1497 = vsel %vm1495, %v1485, 2102212464
    %v1498 = vsel %vm1494, %v1482, %v1497
    %v1499 = vsel %vm1493, %v1496, %v1498
    %v1500 = vsel %vm1492, %v1479, %v1482
    %v1501 = vsel %vm1495, %v1488, 920167782
    %v1502 = vsel %vm1494, %v1485, %v1501
    %v1503 = vsel %vm1493, %v1500, %v1502
    %v1504 = vsel %vm1492, %v1482, %v1485
    %v1505 = vsel %vm1495, %v1491, 1326507024
    %v1506 = vsel %vm1494, %v1488, %v1505
    %v1507 = vsel %vm1493, %v1504, %v1506
    %v1508 = vshll.u32 %v1468, 8
    %v1509 = vmul.u32.u64.compose %v1508, %v1507
    %v1510 = vextract.low.u32 %v1509
    %v1511 = vextract.high.u32 %v1509
    %v1512 = vmul.u32.u64.compose %v1508, %v1503
    %v1513 = vextract.low.u32 %v1512
    %v1514 = vextract.high.u32 %v1512
    %v1515 = vmul.u32 %v1508, %v1499
    %v1516 = vadd.s32 %v1511, %v1513
    %vm1517 = vc.u32 %v1511, %v1513
    %v1518 = vadd.s32 %v1514, 1
    %v1519 = vsel %vm1517, %v1518, %v1514
    %v1520 = vadd.s32 %v1515, %v1519
    %v1521 = vadd.s32 %v1520, 536870912
    %v1522 = vshrl.u32 %v1521, 30
    %v1523 = vshll.u32 %v1522, 30
    %v1524 = vsub.s32 %v1520, %v1523
    %vm1525 = vcmp.lt.s32.totalorder %v1524, 0
    %v1526 = vsub.s32 0, %v1524
    %v1527 = vsel %vm1525, %v1526, %v1524
    %v1528 = vclz %v1527
    %v1529 = vsub.s32 %v1528, 2
    %vm1530 = vcmp.gt.s32.totalorder 0, %v1529
    %v1531 = vsel %vm1530, 0, %v1529
    %v1532 = vsub.s32 32, %v1531
    %v1533 = vshll.u32 %v1524, %v1531
    %v1534 = vshrl.u32 %v1516, %v1532
    %v1535 = vor.u32 %v1533, %v1534
    %v1536 = vsub.s32 4294967266, %v1531
    %v1537 = vadd.s32 %v1536, 127
    %v1538 = vshll.u32 %v1537, 23
    %v1539 = vor.u32 4788187, %v1538
    %v1540 = vand.u32 2147483647, %v1539
    %v1542 = vcvt.s32.f32 %v1535
    %v1543 = vmul.f32 %v1542, %v1540
    %v1544 = vxor.u32 %v1543, 2147483648
    %v1545 = vsel %vm1462, %v1544, %v1543
    %v1546 = vsub.s32 4, %v1522
    %v1547 = vsel %vm1462, %v1546, %v1522
    %v1548 = vsel %vm1461, %v208, %v1545
    %v1549 = vsel %vm1461, 0, %v1547
    %v1550 = vcosq.f32.pop %v1548
    %v1551 = vsinq.f32.pop %v1548
    %vm1552 = vweird.f32 %v208
    %v1553 = vadd.s32 %v1549, 3
    %v1554 = vand.u32 %v1553, 3
    %vm1555 = vcmp.lt.s32.totalorder %v1554, 2
    %vm1556 = vcmp.eq.s32.totalorder %v1554, 0
    %v1557 = vxor.u32 %v1551, 2147483648
    %v1558 = vsel %vm1556, %v1550, %v1557
    %vm1559 = vcmp.eq.s32.totalorder %v1554, 2
    %v1560 = vxor.u32 %v1550, 2147483648
    %v1561 = vsel %vm1559, %v1560, %v1551
    %v1562 = vsel %vm1555, %v1558, %v1561
    %v1563 = vsel %vm1552, nan, %v1562
    %v1564 = vand.u32 2147483647, %v209
    %vm1565 = vcmp.le.f32.partialorder %v1564, 0.7853982
    %vm1566 = vcmp.lt.s32.totalorder %v209, 0
    %v1567 = vand.u32 %v209, 2139095040
    %v1568 = vshrl.u32 %v1567, 23
    %v1569 = vsub.s32 %v1568, 127
    %v1570 = vand.u32 2147483647, %v209
    %v1571 = vand.u32 %v1570, 8388607
    %v1572 = vor.u32 %v1571, 8388608
    %v1573 = vsub.s32 0, %v1572
    %v1574 = vadd.s32 %v1569, 1
    %vm1575 = vcmp.gt.s32.totalorder %v1574, 0
    %v1576 = vsel %vm1575, %v1574, 0
    %v1577 = vshrl.u32 %v1576, 5
    %v1578 = vand.u32 %v1576, 31
    %v1579 = vsub.s32 32, %v1578
    %v1580 = vshrl.u32 683565275, %v1579
    %v1581 = vshll.u32 683565275, %v1578
    %v1582 = vshrl.u32 2475754826, %v1579
    %v1583 = vor.u32 %v1581, %v1582
    %v1584 = vshll.u32 2475754826, %v1578
    %v1585 = vshrl.u32 2131351028, %v1579
    %v1586 = vor.u32 %v1584, %v1585
    %v1587 = vshll.u32 2131351028, %v1578
    %v1588 = vshrl.u32 2102212464, %v1579
    %v1589 = vor.u32 %v1587, %v1588
    %v1590 = vshll.u32 2102212464, %v1578
    %v1591 = vshrl.u32 920167782, %v1579
    %v1592 = vor.u32 %v1590, %v1591
    %v1593 = vshll.u32 920167782, %v1578
    %v1594 = vshrl.u32 1326507024, %v1579
    %v1595 = vor.u32 %v1593, %v1594
    %vm1596 = vcmp.lt.s32.totalorder %v1577, 1
    %vm1597 = vcmp.lt.s32.totalorder %v1577, 2
    %vm1598 = vcmp.lt.s32.totalorder %v1577, 3
    %vm1599 = vcmp.lt.s32.totalorder %v1577, 4
    %v1600 = vsel %vm1596, %v1580, %v1583
    %v1601 = vsel %vm1599, %v1589, 2102212464
    %v1602 = vsel %vm1598, %v1586, %v1601
    %v1603 = vsel %vm1597, %v1600, %v1602
    %v1604 = vsel %vm1596, %v1583, %v1586
    %v1605 = vsel %vm1599, %v1592, 920167782
    %v1606 = vsel %vm1598, %v1589, %v1605
    %v1607 = vsel %vm1597, %v1604, %v1606
    %v1608 = vsel %vm1596, %v1586, %v1589
    %v1609 = vsel %vm1599, %v1595, 1326507024
    %v1610 = vsel %vm1598, %v1592, %v1609
    %v1611 = vsel %vm1597, %v1608, %v1610
    %v1612 = vshll.u32 %v1572, 8
    %v1613 = vmul.u32.u64.compose %v1612, %v1611
    %v1614 = vextract.low.u32 %v1613
    %v1615 = vextract.high.u32 %v1613
    %v1616 = vmul.u32.u64.compose %v1612, %v1607
    %v1617 = vextract.low.u32 %v1616
    %v1618 = vextract.high.u32 %v1616
    %v1619 = vmul.u32 %v1612, %v1603
    %v1620 = vadd.s32 %v1615, %v1617
    %vm1621 = vc.u32 %v1615, %v1617
    %v1622 = vadd.s32 %v1618, 1
    %v1623 = vsel %vm1621, %v1622, %v1618
    %v1624 = vadd.s32 %v1619, %v1623
    %v1625 = vadd.s32 %v1624, 536870912
    %v1626 = vshrl.u32 %v1625, 30
    %v1627 = vshll.u32 %v1626, 30
    %v1628 = vsub.s32 %v1624, %v1627
    %vm1629 = vcmp.lt.s32.totalorder %v1628, 0
    %v1630 = vsub.s32 0, %v1628
    %v1631 = vsel %vm1629, %v1630, %v1628
    %v1632 = vclz %v1631
    %v1633 = vsub.s32 %v1632, 2
    %vm1634 = vcmp.gt.s32.totalorder 0, %v1633
    %v1635 = vsel %vm1634, 0, %v1633
    %v1636 = vsub.s32 32, %v1635
    %v1637 = vshll.u32 %v1628, %v1635
    %v1638 = vshrl.u32 %v1620, %v1636
    %v1639 = vor.u32 %v1637, %v1638
    %v1640 = vsub.s32 4294967266, %v1635
    %v1641 = vadd.s32 %v1640, 127
    %v1642 = vshll.u32 %v1641, 23
    %v1643 = vor.u32 4788187, %v1642
    %v1644 = vand.u32 2147483647, %v1643
    %v1646 = vcvt.s32.f32 %v1639
    %v1647 = vmul.f32 %v1646, %v1644
    %v1648 = vxor.u32 %v1647, 2147483648
    %v1649 = vsel %vm1566, %v1648, %v1647
    %v1650 = vsub.s32 4, %v1626
    %v1651 = vsel %vm1566, %v1650, %v1626
    %v1652 = vsel %vm1565, %v209, %v1649
    %v1653 = vsel %vm1565, 0, %v1651
    %v1654 = vcosq.f32.pop %v1652
    %v1655 = vsinq.f32.pop %v1652
    %vm1656 = vweird.f32 %v209
    %v1657 = vadd.s32 %v1653, 3
    %v1658 = vand.u32 %v1657, 3
    %vm1659 = vcmp.lt.s32.totalorder %v1658, 2
    %vm1660 = vcmp.eq.s32.totalorder %v1658, 0
    %v1661 = vxor.u32 %v1655, 2147483648
    %v1662 = vsel %vm1660, %v1654, %v1661
    %vm1663 = vcmp.eq.s32.totalorder %v1658, 2
    %v1664 = vxor.u32 %v1654, 2147483648
    %v1665 = vsel %vm1663, %v1664, %v1655
    %v1666 = vsel %vm1659, %v1662, %v1665
    %v1667 = vsel %vm1656, nan, %v1666
    %v1668 = vand.u32 2147483647, %v210
    %vm1669 = vcmp.le.f32.partialorder %v1668, 0.7853982
    %vm1670 = vcmp.lt.s32.totalorder %v210, 0
    %v1671 = vand.u32 %v210, 2139095040
    %v1672 = vshrl.u32 %v1671, 23
    %v1673 = vsub.s32 %v1672, 127
    %v1674 = vand.u32 2147483647, %v210
    %v1675 = vand.u32 %v1674, 8388607
    %v1676 = vor.u32 %v1675, 8388608
    %v1677 = vsub.s32 0, %v1676
    %v1678 = vadd.s32 %v1673, 1
    %vm1679 = vcmp.gt.s32.totalorder %v1678, 0
    %v1680 = vsel %vm1679, %v1678, 0
    %v1681 = vshrl.u32 %v1680, 5
    %v1682 = vand.u32 %v1680, 31
    %v1683 = vsub.s32 32, %v1682
    %v1684 = vshrl.u32 683565275, %v1683
    %v1685 = vshll.u32 683565275, %v1682
    %v1686 = vshrl.u32 2475754826, %v1683
    %v1687 = vor.u32 %v1685, %v1686
    %v1688 = vshll.u32 2475754826, %v1682
    %v1689 = vshrl.u32 2131351028, %v1683
    %v1690 = vor.u32 %v1688, %v1689
    %v1691 = vshll.u32 2131351028, %v1682
    %v1692 = vshrl.u32 2102212464, %v1683
    %v1693 = vor.u32 %v1691, %v1692
    %v1694 = vshll.u32 2102212464, %v1682
    %v1695 = vshrl.u32 920167782, %v1683
    %v1696 = vor.u32 %v1694, %v1695
    %v1697 = vshll.u32 920167782, %v1682
    %v1698 = vshrl.u32 1326507024, %v1683
    %v1699 = vor.u32 %v1697, %v1698
    %vm1700 = vcmp.lt.s32.totalorder %v1681, 1
    %vm1701 = vcmp.lt.s32.totalorder %v1681, 2
    %vm1702 = vcmp.lt.s32.totalorder %v1681, 3
    %vm1703 = vcmp.lt.s32.totalorder %v1681, 4
    %v1704 = vsel %vm1700, %v1684, %v1687
    %v1705 = vsel %vm1703, %v1693, 2102212464
    %v1706 = vsel %vm1702, %v1690, %v1705
    %v1707 = vsel %vm1701, %v1704, %v1706
    %v1708 = vsel %vm1700, %v1687, %v1690
    %v1709 = vsel %vm1703, %v1696, 920167782
    %v1710 = vsel %vm1702, %v1693, %v1709
    %v1711 = vsel %vm1701, %v1708, %v1710
    %v1712 = vsel %vm1700, %v1690, %v1693
    %v1713 = vsel %vm1703, %v1699, 1326507024
    %v1714 = vsel %vm1702, %v1696, %v1713
    %v1715 = vsel %vm1701, %v1712, %v1714
    %v1716 = vshll.u32 %v1676, 8
    %v1717 = vmul.u32.u64.compose %v1716, %v1715
    %v1718 = vextract.low.u32 %v1717
    %v1719 = vextract.high.u32 %v1717
    %v1720 = vmul.u32.u64.compose %v1716, %v1711
    %v1721 = vextract.low.u32 %v1720
    %v1722 = vextract.high.u32 %v1720
    %v1723 = vmul.u32 %v1716, %v1707
    %v1724 = vadd.s32 %v1719, %v1721
    %vm1725 = vc.u32 %v1719, %v1721
    %v1726 = vadd.s32 %v1722, 1
    %v1727 = vsel %vm1725, %v1726, %v1722
    %v1728 = vadd.s32 %v1723, %v1727
    %v1729 = vadd.s32 %v1728, 536870912
    %v1730 = vshrl.u32 %v1729, 30
    %v1731 = vshll.u32 %v1730, 30
    %v1732 = vsub.s32 %v1728, %v1731
    %vm1733 = vcmp.lt.s32.totalorder %v1732, 0
    %v1734 = vsub.s32 0, %v1732
    %v1735 = vsel %vm1733, %v1734, %v1732
    %v1736 = vclz %v1735
    %v1737 = vsub.s32 %v1736, 2
    %vm1738 = vcmp.gt.s32.totalorder 0, %v1737
    %v1739 = vsel %vm1738, 0, %v1737
    %v1740 = vsub.s32 32, %v1739
    %v1741 = vshll.u32 %v1732, %v1739
    %v1742 = vshrl.u32 %v1724, %v1740
    %v1743 = vor.u32 %v1741, %v1742
    %v1744 = vsub.s32 4294967266, %v1739
    %v1745 = vadd.s32 %v1744, 127
    %v1746 = vshll.u32 %v1745, 23
    %v1747 = vor.u32 4788187, %v1746
    %v1748 = vand.u32 2147483647, %v1747
    %v1750 = vcvt.s32.f32 %v1743
    %v1751 = vmul.f32 %v1750, %v1748
    %v1752 = vxor.u32 %v1751, 2147483648
    %v1753 = vsel %vm1670, %v1752, %v1751
    %v1754 = vsub.s32 4, %v1730
    %v1755 = vsel %vm1670, %v1754, %v1730
    %v1756 = vsel %vm1669, %v210, %v1753
    %v1757 = vsel %vm1669, 0, %v1755
    %v1758 = vcosq.f32.pop %v1756
    %v1759 = vsinq.f32.pop %v1756
    %vm1760 = vweird.f32 %v210
    %v1761 = vadd.s32 %v1757, 3
    %v1762 = vand.u32 %v1761, 3
    %vm1763 = vcmp.lt.s32.totalorder %v1762, 2
    %vm1764 = vcmp.eq.s32.totalorder %v1762, 0
    %v1765 = vxor.u32 %v1759, 2147483648
    %v1766 = vsel %vm1764, %v1758, %v1765
    %vm1767 = vcmp.eq.s32.totalorder %v1762, 2
    %v1768 = vxor.u32 %v1758, 2147483648
    %v1769 = vsel %vm1767, %v1768, %v1759
    %v1770 = vsel %vm1763, %v1766, %v1769
    %v1771 = vsel %vm1760, nan, %v1770
    %v1772 = vand.u32 2147483647, %v211
    %vm1773 = vcmp.le.f32.partialorder %v1772, 0.7853982
    %vm1774 = vcmp.lt.s32.totalorder %v211, 0
    %v1775 = vand.u32 %v211, 2139095040
    %v1776 = vshrl.u32 %v1775, 23
    %v1777 = vsub.s32 %v1776, 127
    %v1778 = vand.u32 2147483647, %v211
    %v1779 = vand.u32 %v1778, 8388607
    %v1780 = vor.u32 %v1779, 8388608
    %v1781 = vsub.s32 0, %v1780
    %v1782 = vadd.s32 %v1777, 1
    %vm1783 = vcmp.gt.s32.totalorder %v1782, 0
    %v1784 = vsel %vm1783, %v1782, 0
    %v1785 = vshrl.u32 %v1784, 5
    %v1786 = vand.u32 %v1784, 31
    %v1787 = vsub.s32 32, %v1786
    %v1788 = vshrl.u32 683565275, %v1787
    %v1789 = vshll.u32 683565275, %v1786
    %v1790 = vshrl.u32 2475754826, %v1787
    %v1791 = vor.u32 %v1789, %v1790
    %v1792 = vshll.u32 2475754826, %v1786
    %v1793 = vshrl.u32 2131351028, %v1787
    %v1794 = vor.u32 %v1792, %v1793
    %v1795 = vshll.u32 2131351028, %v1786
    %v1796 = vshrl.u32 2102212464, %v1787
    %v1797 = vor.u32 %v1795, %v1796
    %v1798 = vshll.u32 2102212464, %v1786
    %v1799 = vshrl.u32 920167782, %v1787
    %v1800 = vor.u32 %v1798, %v1799
    %v1801 = vshll.u32 920167782, %v1786
    %v1802 = vshrl.u32 1326507024, %v1787
    %v1803 = vor.u32 %v1801, %v1802
    %vm1804 = vcmp.lt.s32.totalorder %v1785, 1
    %vm1805 = vcmp.lt.s32.totalorder %v1785, 2
    %vm1806 = vcmp.lt.s32.totalorder %v1785, 3
    %vm1807 = vcmp.lt.s32.totalorder %v1785, 4
    %v1808 = vsel %vm1804, %v1788, %v1791
    %v1809 = vsel %vm1807, %v1797, 2102212464
    %v1810 = vsel %vm1806, %v1794, %v1809
    %v1811 = vsel %vm1805, %v1808, %v1810
    %v1812 = vsel %vm1804, %v1791, %v1794
    %v1813 = vsel %vm1807, %v1800, 920167782
    %v1814 = vsel %vm1806, %v1797, %v1813
    %v1815 = vsel %vm1805, %v1812, %v1814
    %v1816 = vsel %vm1804, %v1794, %v1797
    %v1817 = vsel %vm1807, %v1803, 1326507024
    %v1818 = vsel %vm1806, %v1800, %v1817
    %v1819 = vsel %vm1805, %v1816, %v1818
    %v1820 = vshll.u32 %v1780, 8
    %v1821 = vmul.u32.u64.compose %v1820, %v1819
    %v1822 = vextract.low.u32 %v1821
    %v1823 = vextract.high.u32 %v1821
    %v1824 = vmul.u32.u64.compose %v1820, %v1815
    %v1825 = vextract.low.u32 %v1824
    %v1826 = vextract.high.u32 %v1824
    %v1827 = vmul.u32 %v1820, %v1811
    %v1828 = vadd.s32 %v1823, %v1825
    %vm1829 = vc.u32 %v1823, %v1825
    %v1830 = vadd.s32 %v1826, 1
    %v1831 = vsel %vm1829, %v1830, %v1826
    %v1832 = vadd.s32 %v1827, %v1831
    %v1833 = vadd.s32 %v1832, 536870912
    %v1834 = vshrl.u32 %v1833, 30
    %v1835 = vshll.u32 %v1834, 30
    %v1836 = vsub.s32 %v1832, %v1835
    %vm1837 = vcmp.lt.s32.totalorder %v1836, 0
    %v1838 = vsub.s32 0, %v1836
    %v1839 = vsel %vm1837, %v1838, %v1836
    %v1840 = vclz %v1839
    %v1841 = vsub.s32 %v1840, 2
    %vm1842 = vcmp.gt.s32.totalorder 0, %v1841
    %v1843 = vsel %vm1842, 0, %v1841
    %v1844 = vsub.s32 32, %v1843
    %v1845 = vshll.u32 %v1836, %v1843
    %v1846 = vshrl.u32 %v1828, %v1844
    %v1847 = vor.u32 %v1845, %v1846
    %v1848 = vsub.s32 4294967266, %v1843
    %v1849 = vadd.s32 %v1848, 127
    %v1850 = vshll.u32 %v1849, 23
    %v1851 = vor.u32 4788187, %v1850
    %v1852 = vand.u32 2147483647, %v1851
    %v1854 = vcvt.s32.f32 %v1847
    %v1855 = vmul.f32 %v1854, %v1852
    %v1856 = vxor.u32 %v1855, 2147483648
    %v1857 = vsel %vm1774, %v1856, %v1855
    %v1858 = vsub.s32 4, %v1834
    %v1859 = vsel %vm1774, %v1858, %v1834
    %v1860 = vsel %vm1773, %v211, %v1857
    %v1861 = vsel %vm1773, 0, %v1859
    %v1862 = vcosq.f32.pop %v1860
    %v1863 = vsinq.f32.pop %v1860
    %vm1864 = vweird.f32 %v211
    %v1865 = vadd.s32 %v1861, 3
    %v1866 = vand.u32 %v1865, 3
    %vm1867 = vcmp.lt.s32.totalorder %v1866, 2
    %vm1868 = vcmp.eq.s32.totalorder %v1866, 0
    %v1869 = vxor.u32 %v1863, 2147483648
    %v1870 = vsel %vm1868, %v1862, %v1869
    %vm1871 = vcmp.eq.s32.totalorder %v1866, 2
    %v1872 = vxor.u32 %v1862, 2147483648
    %v1873 = vsel %vm1871, %v1872, %v1863
    %v1874 = vsel %vm1867, %v1870, %v1873
    %v1875 = vsel %vm1864, nan, %v1874
    %v1876 = vld [vmem:[%s4] sm:$0xff]
    %v1877 = vld [vmem:[%s4 + $0x8] sm:$0xff]
    %v1878 = vld [vmem:[%s4 + $0x10] sm:$0xff]
    %v1879 = vld [vmem:[%s4 + $0x18] sm:$0xff]
    %v1880 = vld [vmem:[%s5] sm:$0xff]
    %v1881 = vld [vmem:[%s5 + $0x8] sm:$0xff]
    %v1882 = vld [vmem:[%s5 + $0x10] sm:$0xff]
    %v1883 = vld [vmem:[%s5 + $0x18] sm:$0xff]
    %1885 = vset.pattern.permute.xlu0 0
    %1886 = vperm.xlu0 %1885, %v1880
    %v1887 = vpop.permute.xlu0 %1886
    %1890 = vset.pattern.permute.xlu0 0
    %1891 = vperm.xlu0 %1890, %v1881
    %v1892 = vpop.permute.xlu0 %1891
    %1895 = vset.pattern.permute.xlu0 0
    %1896 = vperm.xlu0 %1895, %v1882
    %v1897 = vpop.permute.xlu0 %1896
    %1900 = vset.pattern.permute.xlu0 0
    %1901 = vperm.xlu0 %1900, %v1883
    %v1902 = vpop.permute.xlu0 %1901
    %vm1904 = vcmask 523264
    %v1906 = vsel %vm1904, %v1876, 0
    %v1909 = vsel %vm1904, %v1877, 0
    %v1912 = vsel %vm1904, %v1878, 0
    %v1915 = vsel %vm1904, %v1879, 0
    %1917 = vmatprep.subr.mxu0 %v419
    %1918 = vmatpush1.msra.mxu0 %v315
    %1919 = vmatprep.subr.mxu0 %v627
    %1920 = vmatpush1.msra.mxu0 %v523
    %1921 = vmatprep.subr.mxu0 %v835
    %1922 = vmatpush1.msra.mxu0 %v731
    %1923 = vmatprep.subr.mxu0 %v1043
    %1924 = vmatpush1.msra.mxu0 %v939
    %1925 = vmatprep.subr.mxu0 %v1251
    %1926 = vmatpush1.msra.mxu0 %v1147
    %1927 = vmatprep.subr.mxu0 %v1459
    %1928 = vmatpush1.msra.mxu0 %v1355
    %1929 = vmatprep.subr.mxu0 %v1667
    %1930 = vmatpush1.msra.mxu0 %v1563
    %1931 = vmatprep.subr.mxu0 %v1875
    %1932 = vmatpush1.msra.mxu0 %v1771
    %1933 = vmatprep.subr.mxu0 0.0
    %1934 = vmatpush1.msra.mxu0 0.0
    %1935 = vmatprep.subr.mxu0 0.0
    %1936 = vmatpush1.msra.mxu0 0.0
    %1937 = vmatprep.subr.mxu0 0.0
    %1938 = vmatpush1.msra.mxu0 0.0
    %1939 = vmatprep.subr.mxu0 0.0
    %1940 = vmatpush1.msra.mxu0 0.0
    %1941 = vmatprep.subr.mxu0 0.0
    %1942 = vmatpush1.msra.mxu0 0.0
    %1943 = vmatprep.subr.mxu0 0.0
    %1944 = vmatpush1.msra.mxu0 0.0
    %1945 = vmatprep.subr.mxu0 0.0
    %1946 = vmatpush1.msra.mxu0 0.0
    %1947 = vmatprep.subr.mxu0 0.0
    %1948 = vmatpush1.msra.mxu0 0.0
    %1949 = vmatprep.subr.mxu0 0.0
    %1950 = vmatpush1.msra.mxu0 0.0
    %1951 = vmatprep.subr.mxu0 0.0
    %1952 = vmatpush1.msra.mxu0 0.0
    %1953 = vmatprep.subr.mxu0 0.0
    %1954 = vmatpush1.msra.mxu0 0.0
    %1955 = vmatprep.subr.mxu0 0.0
    %1956 = vmatpush1.msra.mxu0 0.0
    %1957 = vmatprep.subr.mxu0 0.0
    %1958 = vmatpush1.msra.mxu0 0.0
    %1959 = vmatprep.subr.mxu0 0.0
    %1960 = vmatpush1.msra.mxu0 0.0
    %1961 = vmatprep.subr.mxu0 0.0
    %1962 = vmatpush1.msra.mxu0 0.0
    %1963 = vmatprep.subr.mxu0 0.0
    %1964 = vmatpush1.msra.mxu0 0.0
    %1965 = vmatprep.subr.mxu0 0.0
    %1966 = vmatpush1.msra.mxu0 0.0
    %1967 = vmatprep.subr.mxu0 0.0
    %1968 = vmatpush1.msra.mxu0 0.0
    %1969 = vmatprep.subr.mxu0 0.0
    %1970 = vmatpush1.msra.mxu0 0.0
    %1971 = vmatprep.subr.mxu0 0.0
    %1972 = vmatpush1.msra.mxu0 0.0
    %1973 = vmatprep.subr.mxu0 0.0
    %1974 = vmatpush1.msra.mxu0 0.0
    %1975 = vmatprep.subr.mxu0 0.0
    %1976 = vmatpush1.msra.mxu0 0.0
    %1977 = vmatprep.subr.mxu0 0.0
    %1978 = vmatpush1.msra.mxu0 0.0
    %1979 = vmatprep.subr.mxu0 0.0
    %1980 = vmatpush1.msra.mxu0 0.0
    %1981 = vmatprep.mubr.f32.mxu0 0.0
    %1982 = vmatmul.mubr.f32.gmra.mrb[0].mxu0 %v1906
    %v1983 = vpop.f32.mrb[0].mxu0
    %v1984 = vadd.f32 %v1887, %v1983
    %v1985 = vpop.f32.mrb[0].mxu0
    %v1986 = vadd.f32 %v1887, %v1985
    %1987 = vmatprep.mubr.f32.mxu0 0.0
    %1988 = vmatmul.mubr.f32.gmra.mrb[0].mxu0 %v1909
    %v1989 = vpop.f32.mrb[0].mxu0
    %v1990 = vadd.f32 %v1892, %v1989
    %v1991 = vpop.f32.mrb[0].mxu0
    %v1992 = vadd.f32 %v1892, %v1991
    %1993 = vmatprep.mubr.f32.mxu0 0.0
    %1994 = vmatmul.mubr.f32.gmra.mrb[0].mxu0 %v1912
    %v1995 = vpop.f32.mrb[0].mxu0
    %v1996 = vadd.f32 %v1897, %v1995
    %v1997 = vpop.f32.mrb[0].mxu0
    %v1998 = vadd.f32 %v1897, %v1997
    %1999 = vmatprep.mubr.f32.mxu0 0.0
    %2000 = vmatmul.mubr.f32.gmra.mrb[0].mxu0 %v1915
    %v2001 = vpop.f32.mrb[0].mxu0
    %v2002 = vadd.f32 %v1902, %v2001
    %v2003 = vpop.f32.mrb[0].mxu0
    %v2004 = vadd.f32 %v1902, %v2003
    %2005 = vdwg.mxu0
    %v2006 = vld [vmem:[%s1] sm:$0xff]
    %v2007 = vld [vmem:[%s1 + $0x8] sm:$0xff]
    %v2008 = vld [vmem:[%s1 + $0x10] sm:$0xff]
    %v2009 = vld [vmem:[%s1 + $0x18] sm:$0xff]
    %v2010 = vld [vmem:[%s1 + $0x20] sm:$0xff]
    %v2011 = vld [vmem:[%s1 + $0x28] sm:$0xff]
    %v2012 = vld [vmem:[%s1 + $0x30] sm:$0xff]
    %v2013 = vld [vmem:[%s1 + $0x38] sm:$0xff]
    %v2014 = vmul.f32 %v1984, %v2006
    %v2015 = vmul.f32 %v1986, %v2007
    %v2016 = vmul.f32 %v1990, %v2008
    %v2017 = vmul.f32 %v1992, %v2009
    %v2018 = vmul.f32 %v1996, %v2010
    %v2019 = vmul.f32 %v1998, %v2011
    %v2020 = vmul.f32 %v2002, %v2012
    %v2021 = vmul.f32 %v2004, %v2013
    %2022 = vst [vmem:[#allocation2] sm:$0xff] %v2014
    %2023 = vst [vmem:[#allocation2 + $0x8] sm:$0xff] %v2015
    %2024 = vst [vmem:[#allocation2 + $0x10] sm:$0xff] %v2016
    %2025 = vst [vmem:[#allocation2 + $0x18] sm:$0xff] %v2017
    %2026 = vst [vmem:[#allocation2 + $0x20] sm:$0xff] %v2018
    %2027 = vst [vmem:[#allocation2 + $0x28] sm:$0xff] %v2019
    %2028 = vst [vmem:[#allocation2 + $0x30] sm:$0xff] %v2020
    %2029 = vst [vmem:[#allocation2 + $0x38] sm:$0xff] %v2021
    // Predicated region
    $region26: #{tpu_custom_call.1} parent=1 // pred_check
      _
    $region27: #{tpu_custom_call.1} parent=1 // pred_check_branch
      %2031 = sbr.rel (0) target = $region29
    $region28: #{tpu_custom_call.1} parent=1 // pred_region
      %s2033 = ssub.s32 1024, 1024
      %2034 = vsyncadd [#allocation3], %s2033
      %s2035 = sshll.u32 [#allocation2], 4
      %s2036 = int_to_ptr.vmem [resolvable:$true] %s2035
      %2041 = dma.vmem_to_hbm [thread:$0]  %s2036, 1024, %s6, [#allocation3], 256, 256, 16
    $region29: #{tpu_custom_call.1} parent=1 // pred_fallthru
      _
    // Predicated region
    $region30: #{tpu_custom_call.1} parent=1 // pred_check
      _
    $region31: #{tpu_custom_call.1} parent=1 // pred_check_branch
      %2043 = sbr.rel (0) target = $region33
    $region32: #{tpu_custom_call.1} parent=1 // pred_region
      %s2045 = ssub.s32 32, 32
      %2046 = vsyncadd [#allocation5], %s2045
      %s2048 = sshll.u32 [#allocation4], 4
      %s2049 = int_to_ptr.vmem [resolvable:$true] %s2048
      %2051 = dma.vmem_to_hbm [thread:$0]  %s2049, 32, %s7, [#allocation5]
    $region33: #{tpu_custom_call.1} parent=1 // pred_fallthru
      _
    // Predicated region
    $region34: #{tpu_custom_call.1} parent=1 // pred_check
      _
    $region35: #{tpu_custom_call.1} parent=1 // pred_check_branch
      %2053 = sbr.rel (0) target = $region37
    $region36: #{tpu_custom_call.1} parent=1 // pred_region
      %2054 = dma.done [#allocation3], 1024
    $region37: #{tpu_custom_call.1} parent=1 // pred_fallthru
      _
    // Predicated region
    $region38: #{tpu_custom_call.1} parent=1 // pred_check
      _
    $region39: #{tpu_custom_call.1} parent=1 // pred_check_branch
      %2056 = sbr.rel (0) target = $region41
    $region40: #{tpu_custom_call.1} parent=1 // pred_region
      %2057 = dma.done [#allocation5], 32
    $region41: #{tpu_custom_call.1} parent=1 // pred_fallthru
      _
    %2058 = vsyncpa [#allocation3], 1
    %2059 = vsyncpa [#allocation5], 1

</llo_original>
